<compile_context>
chip_gen: v6e
topology: v6e:2x2x1
jax: 0.10.0
libtpu: 0.0.40
codegen_flags: <defaults>
</compile_context>

<pallas_src>
import functools

import jax
import jax.numpy as jnp
from jax.experimental import pallas as pl
from jax.experimental.pallas import tpu as pltpu


def _lstm_chunk_kernel(gx_ref, whh_hbm_ref,              # inputs
                       out_ref, hN_ref, cN_ref,          # outputs
                       h_sc, c_sc, w_vmem, w_sem,        # scratch
                       *, reverse, tc):
    """One grid step == one chunk of `tc` timesteps for one batch block.

    gx_ref      : (tc, Bc, 4H)  precomputed x@W_ih^T + bias for this chunk
    whh_hbm_ref : (H, 4H)       recurrent weights, left in HBM (pl.ANY)
    out_ref     : (tc, Bc, H)   time-major output chunk
    hN_ref/cN_ref : (Bc, H)     final hidden / cell state (last chunk only)
    h_sc, c_sc  : (Bc, H) f32   recurrence carry (persists across grid steps)
    w_vmem      : (H, 4H)       single-buffered VMEM copy of the weights
    w_sem       : DMA semaphore for the one-time weight copy
    """
    c_idx = pl.program_id(1)
    n_chunks = pl.num_programs(1)
    H = h_sc.shape[-1]

    @pl.when(c_idx == 0)
    def _():
        # One-time (per batch block) residency copy of the recurrent weights.
        cp = pltpu.make_async_copy(whh_hbm_ref, w_vmem, w_sem)
        cp.start()
        cp.wait()
        h_sc[...] = jnp.zeros_like(h_sc)
        c_sc[...] = jnp.zeros_like(c_sc)

    w = w_vmem[...]                                      # (H, 4H), resident

    def step(s, carry):
        h_prev, c_prev = carry                           # f32 (Bc, H)
        row = (tc - 1 - s) if reverse else s             # in-chunk time index
        gx = gx_ref[row].astype(jnp.float32)             # (Bc, 4H) preactivation
        gates = gx + jnp.dot(h_prev.astype(w.dtype), w,
                             preferred_element_type=jnp.float32)
        # PyTorch LSTMCell gate order: i, f, g, o.
        # NOTE: gate slices are lane-aligned (free) when H is a multiple of 128.
        i_g = jax.nn.sigmoid(gates[:, 0 * H:1 * H])
        f_g = jax.nn.sigmoid(gates[:, 1 * H:2 * H])
        g_g = jnp.tanh(gates[:, 2 * H:3 * H])
        o_g = jax.nn.sigmoid(gates[:, 3 * H:4 * H])
        c_new = f_g * c_prev + i_g * g_g
        h_new = o_g * jnp.tanh(c_new)
        out_ref[row] = h_new.astype(out_ref.dtype)
        return h_new, c_new

    h_fin, c_fin = jax.lax.fori_loop(0, tc, step, (h_sc[...], c_sc[...]),
                                     unroll=True)
    h_sc[...] = h_fin
    c_sc[...] = c_fin

    # Final states only need to be materialized once, on the last time chunk.
    @pl.when(c_idx == n_chunks - 1)
    def _():
        hN_ref[...] = h_fin.astype(hN_ref.dtype)
        cN_ref[...] = c_fin.astype(cN_ref.dtype)


def time_recurrent_lstm(inputs, w_ih, w_hh, b_ih, b_hh, *, reverse=False,
                        time_chunk=16, batch_block=None,
                        compute_dtype=jnp.bfloat16):
    """Pallas equivalent of TimeRecurrentCell(nn.LSTMCell, batch_first=True, lstm=True).

    inputs: (B, T, I)   w_ih: (4H, I)   w_hh: (4H, H)   b_ih/b_hh: (4H,)
    returns (outputs (B, T, H), (h_T (B, H), c_T (B, H)))
    """
    B, T, I = inputs.shape
    H = w_hh.shape[1]
    G = 4 * H

    # ---- Hoisted input projection: one MXU-friendly GEMM over all (t, b)
    # positions, emitted time-major, with the combined bias folded in.
    gates_x = (jnp.einsum("bti,gi->tbg",
                          inputs.astype(compute_dtype),
                          w_ih.astype(compute_dtype),
                          preferred_element_type=jnp.float32)
               + (b_ih + b_hh).astype(jnp.float32))
    gates_x = gates_x.astype(compute_dtype)              # (T, B, 4H)

    whh_t = jnp.transpose(w_hh).astype(compute_dtype)    # (H, 4H)

    # Time chunking: largest divisor of T not exceeding `time_chunk`.
    tc = max(d for d in range(1, min(time_chunk, T) + 1) if T % d == 0)
    nc = T // tc
    # Optional batch blocking (v7x: shard batch across the two TensorCores).
    bc = B if batch_block is None else batch_block
    assert B % bc == 0
    nb = B // bc

    if reverse:
        io_map = lambda b, c: (nc - 1 - c, b, 0)   # walk chunks backwards; rows
    else:                                          # land back at original times
        io_map = lambda b, c: (c, b, 0)

    kernel = functools.partial(_lstm_chunk_kernel, reverse=reverse, tc=tc)

    outs_tm, h_n, c_n = pl.pallas_call(
        kernel,
        out_shape=(
            jax.ShapeDtypeStruct((T, B, H), inputs.dtype),
            jax.ShapeDtypeStruct((B, H), inputs.dtype),
            jax.ShapeDtypeStruct((B, H), inputs.dtype),
        ),
        grid_spec=pltpu.PrefetchScalarGridSpec(
            num_scalar_prefetch=0,
            grid=(nb, nc),
            in_specs=[
                pl.BlockSpec((tc, bc, G), io_map),
                pl.BlockSpec(memory_space=pl.ANY),   # whh stays in HBM; copied once
            ],
            out_specs=(
                pl.BlockSpec((tc, bc, H), io_map),
                pl.BlockSpec((bc, H), lambda b, c: (b, 0)),
                pl.BlockSpec((bc, H), lambda b, c: (b, 0)),
            ),
            scratch_shapes=[
                pltpu.VMEM((bc, H), jnp.float32),    # h carry (f32)
                pltpu.VMEM((bc, H), jnp.float32),    # c carry (f32)
                pltpu.VMEM((H, G), compute_dtype),   # resident recurrent weights
                pltpu.SemaphoreType.DMA,             # weight-copy semaphore
            ],
        ),
        compiler_params=pltpu.CompilerParams(
            dimension_semantics=("parallel", "arbitrary"),  # batch || , time serial
            vmem_limit_bytes=48 * 1024 * 1024,              # headroom on v7x (64 MiB)
        ),
    )(gates_x, whh_t)

    # TODO(synk): batch_first=False, caller-provided initial hidden, and non-LSTM
    # cells of the generic TimeRecurrentCell are not covered by this specialization.
    outputs = jnp.transpose(outs_tm, (1, 0, 2))            # back to (B, T, H)
    return outputs, (h_n, c_n)


def _reference(inputs, w_ih, w_hh, b_ih, b_hh, *, reverse=False):
    """Pure-JAX f32 reference mirroring the PyTorch time loop."""
    B, T, I = inputs.shape
    H = w_hh.shape[1]
    h = jnp.zeros((B, H), jnp.float32)
    c = jnp.zeros((B, H), jnp.float32)
    bias = b_ih + b_hh
    outs = [None] * T
    order = range(T - 1, -1, -1) if reverse else range(T)
    for t in order:
        gates = inputs[:, t, :] @ w_ih.T + h @ w_hh.T + bias
        i_g = jax.nn.sigmoid(gates[:, 0 * H:1 * H])
        f_g = jax.nn.sigmoid(gates[:, 1 * H:2 * H])
        g_g = jnp.tanh(gates[:, 2 * H:3 * H])
        o_g = jax.nn.sigmoid(gates[:, 3 * H:4 * H])
        c = f_g * c + i_g * g_g
        h = o_g * jnp.tanh(c)
        outs[t] = h
    return jnp.stack(outs, axis=1), (h, c)


if __name__ == "__main__":
    B, T, I, H = 2, 8, 4, 32
    key = jax.random.PRNGKey(0)
    kx, k1, k2, k3, k4 = jax.random.split(key, 5)

    bound = 1.0 / (H ** 0.5)   # PyTorch LSTMCell default init range
    x = jax.random.normal(kx, (B, T, I), dtype=jnp.float32)
    w_ih = jax.random.uniform(k1, (4 * H, I), jnp.float32, -bound, bound)
    w_hh = jax.random.uniform(k2, (4 * H, H), jnp.float32, -bound, bound)
    b_ih = jax.random.uniform(k3, (4 * H,), jnp.float32, -bound, bound)
    b_hh = jax.random.uniform(k4, (4 * H,), jnp.float32, -bound, bound)

    # (compute dtype, rtol, atol): exact-ish check in f32, loose check for the
    # default bf16 fast path (h/c carry and accumulation stay f32).
    cases = [(jnp.float32, 1e-4, 1e-4), (jnp.bfloat16, 5e-2, 5e-2)]
    for dt, rtol, atol in cases:
        for rev in (False, True):
            for tchunk in (16, 4):   # 4 exercises the multi-chunk carry path
                outs, (h_n, c_n) = time_recurrent_lstm(
                    x, w_ih, w_hh, b_ih, b_hh,
                    reverse=rev, time_chunk=tchunk, compute_dtype=dt)
                jax.block_until_ready(outs)
                ref_outs, (ref_h, ref_c) = _reference(
                    x, w_ih, w_hh, b_ih, b_hh, reverse=rev)
                assert outs.shape == (B, T, H)
                assert h_n.shape == (B, H) and c_n.shape == (B, H)
                assert jnp.allclose(outs, ref_outs, rtol=rtol, atol=atol), (dt, rev, tchunk)
                assert jnp.allclose(h_n, ref_h, rtol=rtol, atol=atol), (dt, rev, tchunk)
                assert jnp.allclose(c_n, ref_c, rtol=rtol, atol=atol), (dt, rev, tchunk)

    print("KERNEL_OK")
</pallas_src>

<mosaic_0001>
module attributes {stable_mosaic.version = 11 : i64} {
  func.func @_lstm_chunk_kernel(%arg0: i32, %arg1: i32, %arg2: memref<8x2x128xf32, #tpu.memory_space<vmem>>, %arg3: memref<32x128xf32, #tpu.memory_space<any>>, %arg4: memref<8x2x32xf32, #tpu.memory_space<vmem>>, %arg5: memref<2x32xf32, #tpu.memory_space<vmem>>, %arg6: memref<2x32xf32, #tpu.memory_space<vmem>>, %arg7: memref<2x32xf32, #tpu.memory_space<vmem>>, %arg8: memref<2x32xf32, #tpu.memory_space<vmem>>, %arg9: memref<32x128xf32, #tpu.memory_space<vmem>>, %arg10: memref<!tpu.dma_semaphore, #tpu.memory_space<semaphore_mem>>) attributes {dimension_semantics = [#tpu.dimension_semantics<parallel>, #tpu.dimension_semantics<arbitrary>], iteration_bounds = array<i64: 1, 1>, scalar_prefetch = 0 : i64, scratch_operands = 4 : i64, tpu.core_type = #tpu.core_type<tc>, window_params = [{transform_indices = @transform_0, window_bounds = array<i64: 8, 2, 128>}, {}, {transform_indices = @transform_2, window_bounds = array<i64: 8, 2, 32>}, {transform_indices = @transform_3, window_bounds = array<i64: 2, 32>}, {transform_indices = @transform_4, window_bounds = array<i64: 2, 32>}]} {
    %c0_i32 = arith.constant 0 : i32
    %0 = arith.cmpi eq, %arg1, %c0_i32 : i32
    %1 = arith.extui %0 : i1 to i32
    %c0_i32_0 = arith.constant 0 : i32
    %2 = arith.cmpi ne, %1, %c0_i32_0 : i32
    scf.if %2 {
      tpu.enqueue_dma source(%arg3 : memref<32x128xf32, #tpu.memory_space<any>>) target(%arg9 : memref<32x128xf32, #tpu.memory_space<vmem>>) target_semaphore(%arg10 : memref<!tpu.dma_semaphore, #tpu.memory_space<semaphore_mem>>)
      tpu.wait_dma2 semaphore(%arg10 : memref<!tpu.dma_semaphore, #tpu.memory_space<semaphore_mem>>) src(%arg3 : memref<32x128xf32, #tpu.memory_space<any>>) dst(%arg9 : memref<32x128xf32, #tpu.memory_space<vmem>>)
      %cst_76 = arith.constant 0.000000e+00 : f32
      %283 = vector.broadcast %cst_76 : f32 to vector<2x32xf32>
      %c0_77 = arith.constant 0 : index
      %c0_78 = arith.constant 0 : index
      %284 = vector.load %arg7[%c0_77, %c0_78] : memref<2x32xf32, #tpu.memory_space<vmem>>, vector<2x32xf32>
      tpu.vector_store %arg7[%c0_77, %c0_78], %283 {strides = array<i32>} : memref<2x32xf32, #tpu.memory_space<vmem>>, vector<2x32xf32>,
      %cst_79 = arith.constant 0.000000e+00 : f32
      %285 = vector.broadcast %cst_79 : f32 to vector<2x32xf32>
      %c0_80 = arith.constant 0 : index
      %c0_81 = arith.constant 0 : index
      %286 = vector.load %arg8[%c0_80, %c0_81] : memref<2x32xf32, #tpu.memory_space<vmem>>, vector<2x32xf32>
      tpu.vector_store %arg8[%c0_80, %c0_81], %285 {strides = array<i32>} : memref<2x32xf32, #tpu.memory_space<vmem>>, vector<2x32xf32>,
    } else {
    }
    %c0 = arith.constant 0 : index
    %c0_1 = arith.constant 0 : index
    %3 = vector.load %arg9[%c0, %c0_1] : memref<32x128xf32, #tpu.memory_space<vmem>>, vector<32x128xf32>
    %c0_2 = arith.constant 0 : index
    %c0_3 = arith.constant 0 : index
    %4 = vector.load %arg7[%c0_2, %c0_3] : memref<2x32xf32, #tpu.memory_space<vmem>>, vector<2x32xf32>
    %c0_4 = arith.constant 0 : index
    %c0_5 = arith.constant 0 : index
    %5 = vector.load %arg8[%c0_4, %c0_5] : memref<2x32xf32, #tpu.memory_space<vmem>>, vector<2x32xf32>
    %c0_i32_6 = arith.constant 0 : i32
    %6 = arith.index_cast %c0_i32_6 : i32 to index
    %c0_7 = arith.constant 0 : index
    %c0_8 = arith.constant 0 : index
    %7 = vector.load %arg2[%6, %c0_7, %c0_8] : memref<8x2x128xf32, #tpu.memory_space<vmem>>, vector<1x2x128xf32>
    %8 = vector.shape_cast %7 : vector<1x2x128xf32> to vector<2x128xf32>
    %cst = arith.constant dense<0.000000e+00> : vector<2x128xf32>
    %9 = tpu.matmul %4, %3, %cst {dimension_numbers = #tpu.dot_dimension_numbers<[1], [0], [0], [1], [0, 0, 1, 1], [], []>} : vector<2x32xf32>, vector<32x128xf32>, vector<2x128xf32> -> vector<2x128xf32>
    %10 = arith.addf %8, %9 : vector<2x128xf32>
    %11 = vector.extract_strided_slice %10 {offsets = [0, 0], sizes = [2, 32], strides = [1, 1]} : vector<2x128xf32> to vector<2x32xf32>
    %12 = arith.negf %11 : vector<2x32xf32>
    %13 = math.exp %12 : vector<2x32xf32>
    %cst_9 = arith.constant 1.000000e+00 : f32
    %14 = vector.broadcast %cst_9 : f32 to vector<2x32xf32>
    %15 = arith.addf %14, %13 : vector<2x32xf32>
    %16 = arith.divf %14, %15 : vector<2x32xf32>
    %17 = vector.extract_strided_slice %10 {offsets = [0, 32], sizes = [2, 32], strides = [1, 1]} : vector<2x128xf32> to vector<2x32xf32>
    %18 = arith.negf %17 : vector<2x32xf32>
    %19 = math.exp %18 : vector<2x32xf32>
    %cst_10 = arith.constant 1.000000e+00 : f32
    %20 = vector.broadcast %cst_10 : f32 to vector<2x32xf32>
    %21 = arith.addf %20, %19 : vector<2x32xf32>
    %22 = arith.divf %20, %21 : vector<2x32xf32>
    %23 = vector.extract_strided_slice %10 {offsets = [0, 64], sizes = [2, 32], strides = [1, 1]} : vector<2x128xf32> to vector<2x32xf32>
    %24 = math.tanh %23 : vector<2x32xf32>
    %25 = vector.extract_strided_slice %10 {offsets = [0, 96], sizes = [2, 32], strides = [1, 1]} : vector<2x128xf32> to vector<2x32xf32>
    %26 = arith.negf %25 : vector<2x32xf32>
    %27 = math.exp %26 : vector<2x32xf32>
    %cst_11 = arith.constant 1.000000e+00 : f32
    %28 = vector.broadcast %cst_11 : f32 to vector<2x32xf32>
    %29 = arith.addf %28, %27 : vector<2x32xf32>
    %30 = arith.divf %28, %29 : vector<2x32xf32>
    %31 = arith.mulf %22, %5 : vector<2x32xf32>
    %32 = arith.mulf %16, %24 : vector<2x32xf32>
    %33 = arith.addf %31, %32 : vector<2x32xf32>
    %34 = math.tanh %33 : vector<2x32xf32>
    %35 = arith.mulf %30, %34 : vector<2x32xf32>
    %36 = arith.index_cast %c0_i32_6 : i32 to index
    %c0_12 = arith.constant 0 : index
    %c0_13 = arith.constant 0 : index
    %37 = vector.load %arg4[%36, %c0_12, %c0_13] : memref<8x2x32xf32, #tpu.memory_space<vmem>>, vector<1x2x32xf32>
    %38 = vector.shape_cast %37 : vector<1x2x32xf32> to vector<2x32xf32>
    %39 = vector.shape_cast %35 : vector<2x32xf32> to vector<1x2x32xf32>
    tpu.vector_store %arg4[%36, %c0_12, %c0_13], %39 {strides = array<i32>} : memref<8x2x32xf32, #tpu.memory_space<vmem>>, vector<1x2x32xf32>,
    %c1_i32 = arith.constant 1 : i32
    %40 = arith.index_cast %c1_i32 : i32 to index
    %c0_14 = arith.constant 0 : index
    %c0_15 = arith.constant 0 : index
    %41 = vector.load %arg2[%40, %c0_14, %c0_15] : memref<8x2x128xf32, #tpu.memory_space<vmem>>, vector<1x2x128xf32>
    %42 = vector.shape_cast %41 : vector<1x2x128xf32> to vector<2x128xf32>
    %cst_16 = arith.constant dense<0.000000e+00> : vector<2x128xf32>
    %43 = tpu.matmul %35, %3, %cst_16 {dimension_numbers = #tpu.dot_dimension_numbers<[1], [0], [0], [1], [0, 0, 1, 1], [], []>} : vector<2x32xf32>, vector<32x128xf32>, vector<2x128xf32> -> vector<2x128xf32>
    %44 = arith.addf %42, %43 : vector<2x128xf32>
    %45 = vector.extract_strided_slice %44 {offsets = [0, 0], sizes = [2, 32], strides = [1, 1]} : vector<2x128xf32> to vector<2x32xf32>
    %46 = arith.negf %45 : vector<2x32xf32>
    %47 = math.exp %46 : vector<2x32xf32>
    %cst_17 = arith.constant 1.000000e+00 : f32
    %48 = vector.broadcast %cst_17 : f32 to vector<2x32xf32>
    %49 = arith.addf %48, %47 : vector<2x32xf32>
    %50 = arith.divf %48, %49 : vector<2x32xf32>
    %51 = vector.extract_strided_slice %44 {offsets = [0, 32], sizes = [2, 32], strides = [1, 1]} : vector<2x128xf32> to vector<2x32xf32>
    %52 = arith.negf %51 : vector<2x32xf32>
    %53 = math.exp %52 : vector<2x32xf32>
    %cst_18 = arith.constant 1.000000e+00 : f32
    %54 = vector.broadcast %cst_18 : f32 to vector<2x32xf32>
    %55 = arith.addf %54, %53 : vector<2x32xf32>
    %56 = arith.divf %54, %55 : vector<2x32xf32>
    %57 = vector.extract_strided_slice %44 {offsets = [0, 64], sizes = [2, 32], strides = [1, 1]} : vector<2x128xf32> to vector<2x32xf32>
    %58 = math.tanh %57 : vector<2x32xf32>
    %59 = vector.extract_strided_slice %44 {offsets = [0, 96], sizes = [2, 32], strides = [1, 1]} : vector<2x128xf32> to vector<2x32xf32>
    %60 = arith.negf %59 : vector<2x32xf32>
    %61 = math.exp %60 : vector<2x32xf32>
    %cst_19 = arith.constant 1.000000e+00 : f32
    %62 = vector.broadcast %cst_19 : f32 to vector<2x32xf32>
    %63 = arith.addf %62, %61 : vector<2x32xf32>
    %64 = arith.divf %62, %63 : vector<2x32xf32>
    %65 = arith.mulf %56, %33 : vector<2x32xf32>
    %66 = arith.mulf %50, %58 : vector<2x32xf32>
    %67 = arith.addf %65, %66 : vector<2x32xf32>
    %68 = math.tanh %67 : vector<2x32xf32>
    %69 = arith.mulf %64, %68 : vector<2x32xf32>
    %70 = arith.index_cast %c1_i32 : i32 to index
    %c0_20 = arith.constant 0 : index
    %c0_21 = arith.constant 0 : index
    %71 = vector.load %arg4[%70, %c0_20, %c0_21] : memref<8x2x32xf32, #tpu.memory_space<vmem>>, vector<1x2x32xf32>
    %72 = vector.shape_cast %71 : vector<1x2x32xf32> to vector<2x32xf32>
    %73 = vector.shape_cast %69 : vector<2x32xf32> to vector<1x2x32xf32>
    tpu.vector_store %arg4[%70, %c0_20, %c0_21], %73 {strides = array<i32>} : memref<8x2x32xf32, #tpu.memory_space<vmem>>, vector<1x2x32xf32>,
    %c2_i32 = arith.constant 2 : i32
    %74 = arith.index_cast %c2_i32 : i32 to index
    %c0_22 = arith.constant 0 : index
    %c0_23 = arith.constant 0 : index
    %75 = vector.load %arg2[%74, %c0_22, %c0_23] : memref<8x2x128xf32, #tpu.memory_space<vmem>>, vector<1x2x128xf32>
    %76 = vector.shape_cast %75 : vector<1x2x128xf32> to vector<2x128xf32>
    %cst_24 = arith.constant dense<0.000000e+00> : vector<2x128xf32>
    %77 = tpu.matmul %69, %3, %cst_24 {dimension_numbers = #tpu.dot_dimension_numbers<[1], [0], [0], [1], [0, 0, 1, 1], [], []>} : vector<2x32xf32>, vector<32x128xf32>, vector<2x128xf32> -> vector<2x128xf32>
    %78 = arith.addf %76, %77 : vector<2x128xf32>
    %79 = vector.extract_strided_slice %78 {offsets = [0, 0], sizes = [2, 32], strides = [1, 1]} : vector<2x128xf32> to vector<2x32xf32>
    %80 = arith.negf %79 : vector<2x32xf32>
    %81 = math.exp %80 : vector<2x32xf32>
    %cst_25 = arith.constant 1.000000e+00 : f32
    %82 = vector.broadcast %cst_25 : f32 to vector<2x32xf32>
    %83 = arith.addf %82, %81 : vector<2x32xf32>
    %84 = arith.divf %82, %83 : vector<2x32xf32>
    %85 = vector.extract_strided_slice %78 {offsets = [0, 32], sizes = [2, 32], strides = [1, 1]} : vector<2x128xf32> to vector<2x32xf32>
    %86 = arith.negf %85 : vector<2x32xf32>
    %87 = math.exp %86 : vector<2x32xf32>
    %cst_26 = arith.constant 1.000000e+00 : f32
    %88 = vector.broadcast %cst_26 : f32 to vector<2x32xf32>
    %89 = arith.addf %88, %87 : vector<2x32xf32>
    %90 = arith.divf %88, %89 : vector<2x32xf32>
    %91 = vector.extract_strided_slice %78 {offsets = [0, 64], sizes = [2, 32], strides = [1, 1]} : vector<2x128xf32> to vector<2x32xf32>
    %92 = math.tanh %91 : vector<2x32xf32>
    %93 = vector.extract_strided_slice %78 {offsets = [0, 96], sizes = [2, 32], strides = [1, 1]} : vector<2x128xf32> to vector<2x32xf32>
    %94 = arith.negf %93 : vector<2x32xf32>
    %95 = math.exp %94 : vector<2x32xf32>
    %cst_27 = arith.constant 1.000000e+00 : f32
    %96 = vector.broadcast %cst_27 : f32 to vector<2x32xf32>
    %97 = arith.addf %96, %95 : vector<2x32xf32>
    %98 = arith.divf %96, %97 : vector<2x32xf32>
    %99 = arith.mulf %90, %67 : vector<2x32xf32>
    %100 = arith.mulf %84, %92 : vector<2x32xf32>
    %101 = arith.addf %99, %100 : vector<2x32xf32>
    %102 = math.tanh %101 : vector<2x32xf32>
    %103 = arith.mulf %98, %102 : vector<2x32xf32>
    %104 = arith.index_cast %c2_i32 : i32 to index
    %c0_28 = arith.constant 0 : index
    %c0_29 = arith.constant 0 : index
    %105 = vector.load %arg4[%104, %c0_28, %c0_29] : memref<8x2x32xf32, #tpu.memory_space<vmem>>, vector<1x2x32xf32>
    %106 = vector.shape_cast %105 : vector<1x2x32xf32> to vector<2x32xf32>
    %107 = vector.shape_cast %103 : vector<2x32xf32> to vector<1x2x32xf32>
    tpu.vector_store %arg4[%104, %c0_28, %c0_29], %107 {strides = array<i32>} : memref<8x2x32xf32, #tpu.memory_space<vmem>>, vector<1x2x32xf32>,
    %c3_i32 = arith.constant 3 : i32
    %108 = arith.index_cast %c3_i32 : i32 to index
    %c0_30 = arith.constant 0 : index
    %c0_31 = arith.constant 0 : index
    %109 = vector.load %arg2[%108, %c0_30, %c0_31] : memref<8x2x128xf32, #tpu.memory_space<vmem>>, vector<1x2x128xf32>
    %110 = vector.shape_cast %109 : vector<1x2x128xf32> to vector<2x128xf32>
    %cst_32 = arith.constant dense<0.000000e+00> : vector<2x128xf32>
    %111 = tpu.matmul %103, %3, %cst_32 {dimension_numbers = #tpu.dot_dimension_numbers<[1], [0], [0], [1], [0, 0, 1, 1], [], []>} : vector<2x32xf32>, vector<32x128xf32>, vector<2x128xf32> -> vector<2x128xf32>
    %112 = arith.addf %110, %111 : vector<2x128xf32>
    %113 = vector.extract_strided_slice %112 {offsets = [0, 0], sizes = [2, 32], strides = [1, 1]} : vector<2x128xf32> to vector<2x32xf32>
    %114 = arith.negf %113 : vector<2x32xf32>
    %115 = math.exp %114 : vector<2x32xf32>
    %cst_33 = arith.constant 1.000000e+00 : f32
    %116 = vector.broadcast %cst_33 : f32 to vector<2x32xf32>
    %117 = arith.addf %116, %115 : vector<2x32xf32>
    %118 = arith.divf %116, %117 : vector<2x32xf32>
    %119 = vector.extract_strided_slice %112 {offsets = [0, 32], sizes = [2, 32], strides = [1, 1]} : vector<2x128xf32> to vector<2x32xf32>
    %120 = arith.negf %119 : vector<2x32xf32>
    %121 = math.exp %120 : vector<2x32xf32>
    %cst_34 = arith.constant 1.000000e+00 : f32
    %122 = vector.broadcast %cst_34 : f32 to vector<2x32xf32>
    %123 = arith.addf %122, %121 : vector<2x32xf32>
    %124 = arith.divf %122, %123 : vector<2x32xf32>
    %125 = vector.extract_strided_slice %112 {offsets = [0, 64], sizes = [2, 32], strides = [1, 1]} : vector<2x128xf32> to vector<2x32xf32>
    %126 = math.tanh %125 : vector<2x32xf32>
    %127 = vector.extract_strided_slice %112 {offsets = [0, 96], sizes = [2, 32], strides = [1, 1]} : vector<2x128xf32> to vector<2x32xf32>
    %128 = arith.negf %127 : vector<2x32xf32>
    %129 = math.exp %128 : vector<2x32xf32>
    %cst_35 = arith.constant 1.000000e+00 : f32
    %130 = vector.broadcast %cst_35 : f32 to vector<2x32xf32>
    %131 = arith.addf %130, %129 : vector<2x32xf32>
    %132 = arith.divf %130, %131 : vector<2x32xf32>
    %133 = arith.mulf %124, %101 : vector<2x32xf32>
    %134 = arith.mulf %118, %126 : vector<2x32xf32>
    %135 = arith.addf %133, %134 : vector<2x32xf32>
    %136 = math.tanh %135 : vector<2x32xf32>
    %137 = arith.mulf %132, %136 : vector<2x32xf32>
    %138 = arith.index_cast %c3_i32 : i32 to index
    %c0_36 = arith.constant 0 : index
    %c0_37 = arith.constant 0 : index
    %139 = vector.load %arg4[%138, %c0_36, %c0_37] : memref<8x2x32xf32, #tpu.memory_space<vmem>>, vector<1x2x32xf32>
    %140 = vector.shape_cast %139 : vector<1x2x32xf32> to vector<2x32xf32>
    %141 = vector.shape_cast %137 : vector<2x32xf32> to vector<1x2x32xf32>
    tpu.vector_store %arg4[%138, %c0_36, %c0_37], %141 {strides = array<i32>} : memref<8x2x32xf32, #tpu.memory_space<vmem>>, vector<1x2x32xf32>,
    %c4_i32 = arith.constant 4 : i32
    %142 = arith.index_cast %c4_i32 : i32 to index
    %c0_38 = arith.constant 0 : index
    %c0_39 = arith.constant 0 : index
    %143 = vector.load %arg2[%142, %c0_38, %c0_39] : memref<8x2x128xf32, #tpu.memory_space<vmem>>, vector<1x2x128xf32>
    %144 = vector.shape_cast %143 : vector<1x2x128xf32> to vector<2x128xf32>
    %cst_40 = arith.constant dense<0.000000e+00> : vector<2x128xf32>
    %145 = tpu.matmul %137, %3, %cst_40 {dimension_numbers = #tpu.dot_dimension_numbers<[1], [0], [0], [1], [0, 0, 1, 1], [], []>} : vector<2x32xf32>, vector<32x128xf32>, vector<2x128xf32> -> vector<2x128xf32>
    %146 = arith.addf %144, %145 : vector<2x128xf32>
    %147 = vector.extract_strided_slice %146 {offsets = [0, 0], sizes = [2, 32], strides = [1, 1]} : vector<2x128xf32> to vector<2x32xf32>
    %148 = arith.negf %147 : vector<2x32xf32>
    %149 = math.exp %148 : vector<2x32xf32>
    %cst_41 = arith.constant 1.000000e+00 : f32
    %150 = vector.broadcast %cst_41 : f32 to vector<2x32xf32>
    %151 = arith.addf %150, %149 : vector<2x32xf32>
    %152 = arith.divf %150, %151 : vector<2x32xf32>
    %153 = vector.extract_strided_slice %146 {offsets = [0, 32], sizes = [2, 32], strides = [1, 1]} : vector<2x128xf32> to vector<2x32xf32>
    %154 = arith.negf %153 : vector<2x32xf32>
    %155 = math.exp %154 : vector<2x32xf32>
    %cst_42 = arith.constant 1.000000e+00 : f32
    %156 = vector.broadcast %cst_42 : f32 to vector<2x32xf32>
    %157 = arith.addf %156, %155 : vector<2x32xf32>
    %158 = arith.divf %156, %157 : vector<2x32xf32>
    %159 = vector.extract_strided_slice %146 {offsets = [0, 64], sizes = [2, 32], strides = [1, 1]} : vector<2x128xf32> to vector<2x32xf32>
    %160 = math.tanh %159 : vector<2x32xf32>
    %161 = vector.extract_strided_slice %146 {offsets = [0, 96], sizes = [2, 32], strides = [1, 1]} : vector<2x128xf32> to vector<2x32xf32>
    %162 = arith.negf %161 : vector<2x32xf32>
    %163 = math.exp %162 : vector<2x32xf32>
    %cst_43 = arith.constant 1.000000e+00 : f32
    %164 = vector.broadcast %cst_43 : f32 to vector<2x32xf32>
    %165 = arith.addf %164, %163 : vector<2x32xf32>
    %166 = arith.divf %164, %165 : vector<2x32xf32>
    %167 = arith.mulf %158, %135 : vector<2x32xf32>
    %168 = arith.mulf %152, %160 : vector<2x32xf32>
    %169 = arith.addf %167, %168 : vector<2x32xf32>
    %170 = math.tanh %169 : vector<2x32xf32>
    %171 = arith.mulf %166, %170 : vector<2x32xf32>
    %172 = arith.index_cast %c4_i32 : i32 to index
    %c0_44 = arith.constant 0 : index
    %c0_45 = arith.constant 0 : index
    %173 = vector.load %arg4[%172, %c0_44, %c0_45] : memref<8x2x32xf32, #tpu.memory_space<vmem>>, vector<1x2x32xf32>
    %174 = vector.shape_cast %173 : vector<1x2x32xf32> to vector<2x32xf32>
    %175 = vector.shape_cast %171 : vector<2x32xf32> to vector<1x2x32xf32>
    tpu.vector_store %arg4[%172, %c0_44, %c0_45], %175 {strides = array<i32>} : memref<8x2x32xf32, #tpu.memory_space<vmem>>, vector<1x2x32xf32>,
    %c5_i32 = arith.constant 5 : i32
    %176 = arith.index_cast %c5_i32 : i32 to index
    %c0_46 = arith.constant 0 : index
    %c0_47 = arith.constant 0 : index
    %177 = vector.load %arg2[%176, %c0_46, %c0_47] : memref<8x2x128xf32, #tpu.memory_space<vmem>>, vector<1x2x128xf32>
    %178 = vector.shape_cast %177 : vector<1x2x128xf32> to vector<2x128xf32>
    %cst_48 = arith.constant dense<0.000000e+00> : vector<2x128xf32>
    %179 = tpu.matmul %171, %3, %cst_48 {dimension_numbers = #tpu.dot_dimension_numbers<[1], [0], [0], [1], [0, 0, 1, 1], [], []>} : vector<2x32xf32>, vector<32x128xf32>, vector<2x128xf32> -> vector<2x128xf32>
    %180 = arith.addf %178, %179 : vector<2x128xf32>
    %181 = vector.extract_strided_slice %180 {offsets = [0, 0], sizes = [2, 32], strides = [1, 1]} : vector<2x128xf32> to vector<2x32xf32>
    %182 = arith.negf %181 : vector<2x32xf32>
    %183 = math.exp %182 : vector<2x32xf32>
    %cst_49 = arith.constant 1.000000e+00 : f32
    %184 = vector.broadcast %cst_49 : f32 to vector<2x32xf32>
    %185 = arith.addf %184, %183 : vector<2x32xf32>
    %186 = arith.divf %184, %185 : vector<2x32xf32>
    %187 = vector.extract_strided_slice %180 {offsets = [0, 32], sizes = [2, 32], strides = [1, 1]} : vector<2x128xf32> to vector<2x32xf32>
    %188 = arith.negf %187 : vector<2x32xf32>
    %189 = math.exp %188 : vector<2x32xf32>
    %cst_50 = arith.constant 1.000000e+00 : f32
    %190 = vector.broadcast %cst_50 : f32 to vector<2x32xf32>
    %191 = arith.addf %190, %189 : vector<2x32xf32>
    %192 = arith.divf %190, %191 : vector<2x32xf32>
    %193 = vector.extract_strided_slice %180 {offsets = [0, 64], sizes = [2, 32], strides = [1, 1]} : vector<2x128xf32> to vector<2x32xf32>
    %194 = math.tanh %193 : vector<2x32xf32>
    %195 = vector.extract_strided_slice %180 {offsets = [0, 96], sizes = [2, 32], strides = [1, 1]} : vector<2x128xf32> to vector<2x32xf32>
    %196 = arith.negf %195 : vector<2x32xf32>
    %197 = math.exp %196 : vector<2x32xf32>
    %cst_51 = arith.constant 1.000000e+00 : f32
    %198 = vector.broadcast %cst_51 : f32 to vector<2x32xf32>
    %199 = arith.addf %198, %197 : vector<2x32xf32>
    %200 = arith.divf %198, %199 : vector<2x32xf32>
    %201 = arith.mulf %192, %169 : vector<2x32xf32>
    %202 = arith.mulf %186, %194 : vector<2x32xf32>
    %203 = arith.addf %201, %202 : vector<2x32xf32>
    %204 = math.tanh %203 : vector<2x32xf32>
    %205 = arith.mulf %200, %204 : vector<2x32xf32>
    %206 = arith.index_cast %c5_i32 : i32 to index
    %c0_52 = arith.constant 0 : index
    %c0_53 = arith.constant 0 : index
    %207 = vector.load %arg4[%206, %c0_52, %c0_53] : memref<8x2x32xf32, #tpu.memory_space<vmem>>, vector<1x2x32xf32>
    %208 = vector.shape_cast %207 : vector<1x2x32xf32> to vector<2x32xf32>
    %209 = vector.shape_cast %205 : vector<2x32xf32> to vector<1x2x32xf32>
    tpu.vector_store %arg4[%206, %c0_52, %c0_53], %209 {strides = array<i32>} : memref<8x2x32xf32, #tpu.memory_space<vmem>>, vector<1x2x32xf32>,
    %c6_i32 = arith.constant 6 : i32
    %210 = arith.index_cast %c6_i32 : i32 to index
    %c0_54 = arith.constant 0 : index
    %c0_55 = arith.constant 0 : index
    %211 = vector.load %arg2[%210, %c0_54, %c0_55] : memref<8x2x128xf32, #tpu.memory_space<vmem>>, vector<1x2x128xf32>
    %212 = vector.shape_cast %211 : vector<1x2x128xf32> to vector<2x128xf32>
    %cst_56 = arith.constant dense<0.000000e+00> : vector<2x128xf32>
    %213 = tpu.matmul %205, %3, %cst_56 {dimension_numbers = #tpu.dot_dimension_numbers<[1], [0], [0], [1], [0, 0, 1, 1], [], []>} : vector<2x32xf32>, vector<32x128xf32>, vector<2x128xf32> -> vector<2x128xf32>
    %214 = arith.addf %212, %213 : vector<2x128xf32>
    %215 = vector.extract_strided_slice %214 {offsets = [0, 0], sizes = [2, 32], strides = [1, 1]} : vector<2x128xf32> to vector<2x32xf32>
    %216 = arith.negf %215 : vector<2x32xf32>
    %217 = math.exp %216 : vector<2x32xf32>
    %cst_57 = arith.constant 1.000000e+00 : f32
    %218 = vector.broadcast %cst_57 : f32 to vector<2x32xf32>
    %219 = arith.addf %218, %217 : vector<2x32xf32>
    %220 = arith.divf %218, %219 : vector<2x32xf32>
    %221 = vector.extract_strided_slice %214 {offsets = [0, 32], sizes = [2, 32], strides = [1, 1]} : vector<2x128xf32> to vector<2x32xf32>
    %222 = arith.negf %221 : vector<2x32xf32>
    %223 = math.exp %222 : vector<2x32xf32>
    %cst_58 = arith.constant 1.000000e+00 : f32
    %224 = vector.broadcast %cst_58 : f32 to vector<2x32xf32>
    %225 = arith.addf %224, %223 : vector<2x32xf32>
    %226 = arith.divf %224, %225 : vector<2x32xf32>
    %227 = vector.extract_strided_slice %214 {offsets = [0, 64], sizes = [2, 32], strides = [1, 1]} : vector<2x128xf32> to vector<2x32xf32>
    %228 = math.tanh %227 : vector<2x32xf32>
    %229 = vector.extract_strided_slice %214 {offsets = [0, 96], sizes = [2, 32], strides = [1, 1]} : vector<2x128xf32> to vector<2x32xf32>
    %230 = arith.negf %229 : vector<2x32xf32>
    %231 = math.exp %230 : vector<2x32xf32>
    %cst_59 = arith.constant 1.000000e+00 : f32
    %232 = vector.broadcast %cst_59 : f32 to vector<2x32xf32>
    %233 = arith.addf %232, %231 : vector<2x32xf32>
    %234 = arith.divf %232, %233 : vector<2x32xf32>
    %235 = arith.mulf %226, %203 : vector<2x32xf32>
    %236 = arith.mulf %220, %228 : vector<2x32xf32>
    %237 = arith.addf %235, %236 : vector<2x32xf32>
    %238 = math.tanh %237 : vector<2x32xf32>
    %239 = arith.mulf %234, %238 : vector<2x32xf32>
    %240 = arith.index_cast %c6_i32 : i32 to index
    %c0_60 = arith.constant 0 : index
    %c0_61 = arith.constant 0 : index
    %241 = vector.load %arg4[%240, %c0_60, %c0_61] : memref<8x2x32xf32, #tpu.memory_space<vmem>>, vector<1x2x32xf32>
    %242 = vector.shape_cast %241 : vector<1x2x32xf32> to vector<2x32xf32>
    %243 = vector.shape_cast %239 : vector<2x32xf32> to vector<1x2x32xf32>
    tpu.vector_store %arg4[%240, %c0_60, %c0_61], %243 {strides = array<i32>} : memref<8x2x32xf32, #tpu.memory_space<vmem>>, vector<1x2x32xf32>,
    %c7_i32 = arith.constant 7 : i32
    %244 = arith.index_cast %c7_i32 : i32 to index
    %c0_62 = arith.constant 0 : index
    %c0_63 = arith.constant 0 : index
    %245 = vector.load %arg2[%244, %c0_62, %c0_63] : memref<8x2x128xf32, #tpu.memory_space<vmem>>, vector<1x2x128xf32>
    %246 = vector.shape_cast %245 : vector<1x2x128xf32> to vector<2x128xf32>
    %cst_64 = arith.constant dense<0.000000e+00> : vector<2x128xf32>
    %247 = tpu.matmul %239, %3, %cst_64 {dimension_numbers = #tpu.dot_dimension_numbers<[1], [0], [0], [1], [0, 0, 1, 1], [], []>} : vector<2x32xf32>, vector<32x128xf32>, vector<2x128xf32> -> vector<2x128xf32>
    %248 = arith.addf %246, %247 : vector<2x128xf32>
    %249 = vector.extract_strided_slice %248 {offsets = [0, 0], sizes = [2, 32], strides = [1, 1]} : vector<2x128xf32> to vector<2x32xf32>
    %250 = arith.negf %249 : vector<2x32xf32>
    %251 = math.exp %250 : vector<2x32xf32>
    %cst_65 = arith.constant 1.000000e+00 : f32
    %252 = vector.broadcast %cst_65 : f32 to vector<2x32xf32>
    %253 = arith.addf %252, %251 : vector<2x32xf32>
    %254 = arith.divf %252, %253 : vector<2x32xf32>
    %255 = vector.extract_strided_slice %248 {offsets = [0, 32], sizes = [2, 32], strides = [1, 1]} : vector<2x128xf32> to vector<2x32xf32>
    %256 = arith.negf %255 : vector<2x32xf32>
    %257 = math.exp %256 : vector<2x32xf32>
    %cst_66 = arith.constant 1.000000e+00 : f32
    %258 = vector.broadcast %cst_66 : f32 to vector<2x32xf32>
    %259 = arith.addf %258, %257 : vector<2x32xf32>
    %260 = arith.divf %258, %259 : vector<2x32xf32>
    %261 = vector.extract_strided_slice %248 {offsets = [0, 64], sizes = [2, 32], strides = [1, 1]} : vector<2x128xf32> to vector<2x32xf32>
    %262 = math.tanh %261 : vector<2x32xf32>
    %263 = vector.extract_strided_slice %248 {offsets = [0, 96], sizes = [2, 32], strides = [1, 1]} : vector<2x128xf32> to vector<2x32xf32>
    %264 = arith.negf %263 : vector<2x32xf32>
    %265 = math.exp %264 : vector<2x32xf32>
    %cst_67 = arith.constant 1.000000e+00 : f32
    %266 = vector.broadcast %cst_67 : f32 to vector<2x32xf32>
    %267 = arith.addf %266, %265 : vector<2x32xf32>
    %268 = arith.divf %266, %267 : vector<2x32xf32>
    %269 = arith.mulf %260, %237 : vector<2x32xf32>
    %270 = arith.mulf %254, %262 : vector<2x32xf32>
    %271 = arith.addf %269, %270 : vector<2x32xf32>
    %272 = math.tanh %271 : vector<2x32xf32>
    %273 = arith.mulf %268, %272 : vector<2x32xf32>
    %274 = arith.index_cast %c7_i32 : i32 to index
    %c0_68 = arith.constant 0 : index
    %c0_69 = arith.constant 0 : index
    %275 = vector.load %arg4[%274, %c0_68, %c0_69] : memref<8x2x32xf32, #tpu.memory_space<vmem>>, vector<1x2x32xf32>
    %276 = vector.shape_cast %275 : vector<1x2x32xf32> to vector<2x32xf32>
    %277 = vector.shape_cast %273 : vector<2x32xf32> to vector<1x2x32xf32>
    tpu.vector_store %arg4[%274, %c0_68, %c0_69], %277 {strides = array<i32>} : memref<8x2x32xf32, #tpu.memory_space<vmem>>, vector<1x2x32xf32>,
    %c8_i32 = arith.constant 8 : i32
    %c0_70 = arith.constant 0 : index
    %c0_71 = arith.constant 0 : index
    %278 = vector.load %arg7[%c0_70, %c0_71] : memref<2x32xf32, #tpu.memory_space<vmem>>, vector<2x32xf32>
    tpu.vector_store %arg7[%c0_70, %c0_71], %273 {strides = array<i32>} : memref<2x32xf32, #tpu.memory_space<vmem>>, vector<2x32xf32>,
    %c0_72 = arith.constant 0 : index
    %c0_73 = arith.constant 0 : index
    %279 = vector.load %arg8[%c0_72, %c0_73] : memref<2x32xf32, #tpu.memory_space<vmem>>, vector<2x32xf32>
    tpu.vector_store %arg8[%c0_72, %c0_73], %271 {strides = array<i32>} : memref<2x32xf32, #tpu.memory_space<vmem>>, vector<2x32xf32>,
    %c0_i32_74 = arith.constant 0 : i32
    %280 = arith.cmpi eq, %arg1, %c0_i32_74 : i32
    %281 = arith.extui %280 : i1 to i32
    %c0_i32_75 = arith.constant 0 : i32
    %282 = arith.cmpi ne, %281, %c0_i32_75 : i32
    scf.if %282 {
      %c0_76 = arith.constant 0 : index
      %c0_77 = arith.constant 0 : index
      %283 = vector.load %arg5[%c0_76, %c0_77] : memref<2x32xf32, #tpu.memory_space<vmem>>, vector<2x32xf32>
      tpu.vector_store %arg5[%c0_76, %c0_77], %273 {strides = array<i32>} : memref<2x32xf32, #tpu.memory_space<vmem>>, vector<2x32xf32>,
      %c0_78 = arith.constant 0 : index
      %c0_79 = arith.constant 0 : index
      %284 = vector.load %arg6[%c0_78, %c0_79] : memref<2x32xf32, #tpu.memory_space<vmem>>, vector<2x32xf32>
      tpu.vector_store %arg6[%c0_78, %c0_79], %271 {strides = array<i32>} : memref<2x32xf32, #tpu.memory_space<vmem>>, vector<2x32xf32>,
    } else {
    }
    return
  }
  func.func @transform_0(%arg0: i32, %arg1: i32) -> (i32, i32, i32) {
    %c0_i32 = arith.constant 0 : i32
    %c0_i32_0 = arith.constant 0 : i32
    return %arg1, %arg0, %c0_i32 : i32, i32, i32
  }
  func.func @transform_2(%arg0: i32, %arg1: i32) -> (i32, i32, i32) {
    %c0_i32 = arith.constant 0 : i32
    %c0_i32_0 = arith.constant 0 : i32
    return %arg1, %arg0, %c0_i32 : i32, i32, i32
  }
  func.func @transform_3(%arg0: i32, %arg1: i32) -> (i32, i32) {
    %c0_i32 = arith.constant 0 : i32
    %c0_i32_0 = arith.constant 0 : i32
    return %arg0, %c0_i32 : i32, i32
  }
  func.func @transform_4(%arg0: i32, %arg1: i32) -> (i32, i32) {
    %c0_i32 = arith.constant 0 : i32
    %c0_i32_0 = arith.constant 0 : i32
    return %arg0, %c0_i32 : i32, i32
  }
}

</mosaic_0001>

<llo_original>
// kernel: tpu_custom_call.1
$region0: #{tpu_custom_call.1}
  #allocation0 [shape = 'u32[]', space=smem, size = 0x4, offset = 0x4, fixed_abs, tag = 'smem constant byte address 0x4 - core index']
  #allocation1 [shape = 'u32[144,128]{1,0:T(1,128)}', space=vmem, size = 0x12000, scoped, tag = 'internal scratch']
  #allocation2 [shape = 'f32[2,32]{1,0:T(2,128)}', space=vmem, size = 0x400, scoped, tag = 'scratch operand']
  #allocation3 [shape = 'f32[2,32]{1,0:T(2,128)}', space=vmem, size = 0x400, scoped, tag = 'scratch operand']
  #allocation4 [shape = 'f32[32,128]{1,0:T(8,128)}', space=vmem, size = 0x4000, scoped, tag = 'scratch operand']
  #allocation5 [shape = 's32[1]{0}', space=sflag, size = 0x4, scoped, tag = 'scratch operand']
  #allocation13 [shape = 's32[]', space=sflag, size = 0x4, offset = 0, fixed_abs, tag = 'sflag constant byte address 0x0 - dummy sync flag']
  #allocation14 [shape = 's32[]', space=sflag, size = 0x4, offset = 0, fixed_abs, tag = 'sflag constant byte address 0x0 - dummy sync flag']
  #allocation15 [shape = 'u32[]', space=smem, size = 0x4, offset = 0x44, fixed_abs, tag = 'smem constant byte address 0x44 - assertion arg 0']
  #allocation16 [shape = 'u32[]', space=smem, size = 0x4, offset = 0x48, fixed_abs, tag = 'smem constant byte address 0x48 - assertion arg 1']
  %s0 = inlined_call_operand.hbm [shape: f32[8,2,128], index: 0, kind: input, shape index: {}]
  %s1 = inlined_call_operand.hbm [shape: f32[32,128], index: 1, kind: input, shape index: {}]
  %s2 = inlined_call_operand.hbm [shape: f32[8,2,32], index: 2, kind: output, shape index: {0}]
  %s3 = inlined_call_operand.hbm [shape: f32[2,32], index: 3, kind: output, shape index: {1}]
  %s4 = inlined_call_operand.hbm [shape: f32[2,32], index: 4, kind: output, shape index: {2}]
  %5 = xla_tuple %s2, %s3, %s4
  %s6 = sld [smem:[#allocation0]]
  $region46: #{tpu_custom_call.1} parent=0
    _
  %s8 = ssub.s32 1, %s6
  %s9 = scalar_select 0, %s8, %s6
  $region1: #{tpu_custom_call.1} parent=0
    #allocation6 [shape = 'u8[8192]{0}', space=vmem, size = 0x2000, scoped, tag = 'input window, operand 0, single buffered']
    #allocation7 [shape = 's32[1]{0}', space=sflag, size = 0x4, scoped, tag = 'scoped memory for tpu_custom_call.1']
    #allocation8 [shape = 's32[1]{0}', space=sflag, size = 0x4, scoped, tag = 'scoped memory for tpu_custom_call.1']
    #allocation9 [shape = 'u8[8192]{0}', space=vmem, size = 0x2000, scoped, tag = 'output window, operand 0, single buffered']
    #allocation10 [shape = 'u8[1024]{0}', space=vmem, size = 0x400, scoped, tag = 'output window, operand 1, single buffered']
    #allocation11 [shape = 's32[1]{0}', space=sflag, size = 0x4, scoped, tag = 'scoped memory for tpu_custom_call.1']
    #allocation12 [shape = 'u8[1024]{0}', space=vmem, size = 0x400, scoped, tag = 'output window, operand 2, single buffered']
    %10 = vsyncpa [#allocation7], 0
    %11 = vsyncpa [#allocation8], 0
    %12 = vsyncpa [#allocation11], 0
    // Predicated region
    $region2: #{tpu_custom_call.1} parent=1 // pred_check
      _
    $region3: #{tpu_custom_call.1} parent=1 // pred_check_branch
      %14 = sbr.rel (0) target = $region5
    $region4: #{tpu_custom_call.1} parent=1 // pred_region
      %s16 = ssub.s32 256, 256
      %17 = vsyncadd [#allocation7], %s16
      %s18 = sshll.u32 [#allocation6], 4
      %s19 = int_to_ptr.vmem [resolvable:$true] %s18
      %24 = dma.hbm_to_vmem [thread:$0]  %s0, 256, %s19, [#allocation7], 32, 32, 2
    $region5: #{tpu_custom_call.1} parent=1 // pred_fallthru
      _
    // Predicated region
    $region6: #{tpu_custom_call.1} parent=1 // pred_check
      _
    $region7: #{tpu_custom_call.1} parent=1 // pred_check_branch
      %26 = sbr.rel (0) target = $region9
    $region8: #{tpu_custom_call.1} parent=1 // pred_region
      %27 = dma.done [#allocation7], 256
    $region9: #{tpu_custom_call.1} parent=1 // pred_fallthru
      _
    %p28 = scmp.eq.s32.totalorder 0, 0
    // Predicated region
    $region10: #{tpu_custom_call.1} parent=1 // pred_check
      %p29 = pneg %p28
    $region11: #{tpu_custom_call.1} parent=1 // pred_check_branch
      %31 = sbr.rel (%p29) target = $region13
    $region12: #{tpu_custom_call.1} parent=1 // pred_region
      // Predicated region
      $region14: #{tpu_custom_call.1} parent=12 // pred_check
        _
      $region15: #{tpu_custom_call.1} parent=12 // pred_check_branch
        %33 = sbr.rel target = $region17
      $region16: #{tpu_custom_call.1} parent=12 // pred_region
        %34 = sst [smem:[#allocation15]] [#allocation14]
        %35 = sst [smem:[#allocation16]] [#allocation13]
      $region17: #{tpu_custom_call.1} parent=12 // pred_fallthru
        _
      %37 = shalt.err (0)
      %s39 = sshll.u32 [#allocation4], 4
      %s40 = int_to_ptr.vmem [resolvable:$true] %s39
      %42 = dma.hbm_to_vmem [thread:$0]  %s1, 512, %s40, [#allocation5]
      %s43 = smul.u32 32, 1
      %s44 = sshll.u32 %s43, 4
      %45 = dma.done [#allocation5], %s44
      %vm46 = vcmask 254976
      %47 = vst.msk [vmem:[#allocation2] sm:$0x3] %vm46, 0.0
      %48 = vst.msk [vmem:[#allocation3] sm:$0x3] %vm46, 0.0
    $region13: #{tpu_custom_call.1} parent=1 // pred_fallthru
      _
    %v49 = vld [vmem:[#allocation4] sm:$0xff]
    %v50 = vld [vmem:[#allocation4 + $0x8] sm:$0xff]
    %v51 = vld [vmem:[#allocation4 + $0x10] sm:$0xff]
    %v52 = vld [vmem:[#allocation4 + $0x18] sm:$0xff]
    %v53 = vld [vmem:[#allocation2] sm:$0x3]
    %v54 = vld [vmem:[#allocation3] sm:$0x3]
    %v55 = vld [vmem:[#allocation6] sm:$0x3]
    %vm56 = vcmask 261120
    %v58 = vsel %vm56, %v53, 0
    %60 = vmatprep.subr.mxu0 0.0
    %61 = vmatpush1.msra.mxu0 0.0
    %62 = vmatprep.subr.mxu0 0.0
    %63 = vmatpush1.msra.mxu0 0.0
    %64 = vmatprep.subr.mxu0 0.0
    %65 = vmatpush1.msra.mxu0 0.0
    %66 = vmatprep.subr.mxu0 0.0
    %67 = vmatpush1.msra.mxu0 0.0
    %68 = vmatprep.subr.mxu0 0.0
    %69 = vmatpush1.msra.mxu0 0.0
    %70 = vmatprep.subr.mxu0 0.0
    %71 = vmatpush1.msra.mxu0 0.0
    %72 = vmatprep.subr.mxu0 0.0
    %73 = vmatpush1.msra.mxu0 0.0
    %74 = vmatprep.subr.mxu0 0.0
    %75 = vmatpush1.msra.mxu0 0.0
    %76 = vmatprep.subr.mxu0 0.0
    %77 = vmatpush1.msra.mxu0 0.0
    %78 = vmatprep.subr.mxu0 0.0
    %79 = vmatpush1.msra.mxu0 0.0
    %80 = vmatprep.subr.mxu0 0.0
    %81 = vmatpush1.msra.mxu0 0.0
    %82 = vmatprep.subr.mxu0 0.0
    %83 = vmatpush1.msra.mxu0 0.0
    %84 = vmatprep.subr.mxu0 0.0
    %85 = vmatpush1.msra.mxu0 %v52
    %86 = vmatprep.subr.mxu0 0.0
    %87 = vmatpush1.msra.mxu0 %v51
    %88 = vmatprep.subr.mxu0 0.0
    %89 = vmatpush1.msra.mxu0 %v50
    %90 = vmatprep.subr.mxu0 0.0
    %91 = vmatpush1.msra.mxu0 %v49
    %92 = vmatprep.subr.mxu0 0.0
    %93 = vmatpush2.msra.mxu0 0.0
    %94 = vmatprep.subr.mxu0 0.0
    %95 = vmatpush2.msra.mxu0 0.0
    %96 = vmatprep.subr.mxu0 0.0
    %97 = vmatpush2.msra.mxu0 0.0
    %98 = vmatprep.subr.mxu0 0.0
    %99 = vmatpush2.msra.mxu0 0.0
    %100 = vmatprep.subr.mxu0 0.0
    %101 = vmatpush2.msra.mxu0 0.0
    %102 = vmatprep.subr.mxu0 0.0
    %103 = vmatpush2.msra.mxu0 0.0
    %104 = vmatprep.subr.mxu0 0.0
    %105 = vmatpush2.msra.mxu0 0.0
    %106 = vmatprep.subr.mxu0 0.0
    %107 = vmatpush2.msra.mxu0 0.0
    %108 = vmatprep.subr.mxu0 0.0
    %109 = vmatpush2.msra.mxu0 0.0
    %110 = vmatprep.subr.mxu0 0.0
    %111 = vmatpush2.msra.mxu0 0.0
    %112 = vmatprep.subr.mxu0 0.0
    %113 = vmatpush2.msra.mxu0 0.0
    %114 = vmatprep.subr.mxu0 0.0
    %115 = vmatpush2.msra.mxu0 0.0
    %116 = vmatprep.subr.mxu0 0.0
    %117 = vmatpush2.msra.mxu0 0.0
    %118 = vmatprep.subr.mxu0 0.0
    %119 = vmatpush2.msra.mxu0 0.0
    %120 = vmatprep.subr.mxu0 0.0
    %121 = vmatpush2.msra.mxu0 0.0
    %122 = vmatprep.subr.mxu0 0.0
    %123 = vmatpush2.msra.mxu0 0.0
    %124 = vmatprep.mubr.f32.mxu0 0.0
    %125 = vmatmul.mubr.f32.gmra.mxu0 %v58
    %v126 = vpop.f32.mrf.mxu0
    %v127 = vadd.f32 0.0, %v126
    %v128 = vpop.f32.mrf.mxu0
    %129 = vdwg.mxu0
    %v130 = vadd.f32 %v55, %v127
    %v131 = vxor.u32 %v130, 2147483648
    %v132 = vmul.f32 %v131, 1.442695
    %v133 = vpow.pop %v132
    %v134 = vadd.f32 %v133, 1.0
    %v135 = vrcp.pop %v134
    %v136 = vmul.f32 1.0, %v135
    %v137 = vtanh.pop %v130
    %139 = vrot.lane.b32.xlu0 %v54, 32
    %v140 = vpop.permute.xlu0 %139
    %v142 = vmul.f32 %v136, %v140
    %144 = vrot.lane.b32.xlu0 %v137, 64
    %v145 = vpop.permute.xlu0 %144
    %v147 = vmul.f32 %v136, %v145
    %149 = vrot.lane.b32.xlu0 %v147, 32
    %v150 = vpop.permute.xlu0 %149
    %v152 = vadd.f32 %v142, %v150
    %v153 = vtanh.pop %v152
    %155 = vrot.lane.b32.xlu0 %v153, 64
    %v156 = vpop.permute.xlu0 %155
    %v158 = vmul.f32 %v136, %v156
    %160 = vrot.lane.b32.xlu0 %v158, 32
    %v161 = vpop.permute.xlu0 %160
    %vm163 = vcmask 254976
    %164 = vst.msk [vmem:[#allocation9] sm:$0x3] %vm163, %v161
    %s165 = scalar_lea.vmem [#allocation6], 2
    %v166 = vld [vmem:[%s165] sm:$0x3]
    %v167 = vsel %vm56, %v161, 0
    %169 = vmatprep.subr.mxu0 0.0
    %170 = vmatpush1.msra.mxu0 0.0
    %171 = vmatprep.subr.mxu0 0.0
    %172 = vmatpush1.msra.mxu0 0.0
    %173 = vmatprep.subr.mxu0 0.0
    %174 = vmatpush1.msra.mxu0 0.0
    %175 = vmatprep.subr.mxu0 0.0
    %176 = vmatpush1.msra.mxu0 0.0
    %177 = vmatprep.subr.mxu0 0.0
    %178 = vmatpush1.msra.mxu0 0.0
    %179 = vmatprep.subr.mxu0 0.0
    %180 = vmatpush1.msra.mxu0 0.0
    %181 = vmatprep.subr.mxu0 0.0
    %182 = vmatpush1.msra.mxu0 0.0
    %183 = vmatprep.subr.mxu0 0.0
    %184 = vmatpush1.msra.mxu0 0.0
    %185 = vmatprep.subr.mxu0 0.0
    %186 = vmatpush1.msra.mxu0 0.0
    %187 = vmatprep.subr.mxu0 0.0
    %188 = vmatpush1.msra.mxu0 0.0
    %189 = vmatprep.subr.mxu0 0.0
    %190 = vmatpush1.msra.mxu0 0.0
    %191 = vmatprep.subr.mxu0 0.0
    %192 = vmatpush1.msra.mxu0 0.0
    %193 = vmatprep.subr.mxu0 0.0
    %194 = vmatpush1.msra.mxu0 %v52
    %195 = vmatprep.subr.mxu0 0.0
    %196 = vmatpush1.msra.mxu0 %v51
    %197 = vmatprep.subr.mxu0 0.0
    %198 = vmatpush1.msra.mxu0 %v50
    %199 = vmatprep.subr.mxu0 0.0
    %200 = vmatpush1.msra.mxu0 %v49
    %201 = vmatprep.subr.mxu0 0.0
    %202 = vmatpush2.msra.mxu0 0.0
    %203 = vmatprep.subr.mxu0 0.0
    %204 = vmatpush2.msra.mxu0 0.0
    %205 = vmatprep.subr.mxu0 0.0
    %206 = vmatpush2.msra.mxu0 0.0
    %207 = vmatprep.subr.mxu0 0.0
    %208 = vmatpush2.msra.mxu0 0.0
    %209 = vmatprep.subr.mxu0 0.0
    %210 = vmatpush2.msra.mxu0 0.0
    %211 = vmatprep.subr.mxu0 0.0
    %212 = vmatpush2.msra.mxu0 0.0
    %213 = vmatprep.subr.mxu0 0.0
    %214 = vmatpush2.msra.mxu0 0.0
    %215 = vmatprep.subr.mxu0 0.0
    %216 = vmatpush2.msra.mxu0 0.0
    %217 = vmatprep.subr.mxu0 0.0
    %218 = vmatpush2.msra.mxu0 0.0
    %219 = vmatprep.subr.mxu0 0.0
    %220 = vmatpush2.msra.mxu0 0.0
    %221 = vmatprep.subr.mxu0 0.0
    %222 = vmatpush2.msra.mxu0 0.0
    %223 = vmatprep.subr.mxu0 0.0
    %224 = vmatpush2.msra.mxu0 0.0
    %225 = vmatprep.subr.mxu0 0.0
    %226 = vmatpush2.msra.mxu0 0.0
    %227 = vmatprep.subr.mxu0 0.0
    %228 = vmatpush2.msra.mxu0 0.0
    %229 = vmatprep.subr.mxu0 0.0
    %230 = vmatpush2.msra.mxu0 0.0
    %231 = vmatprep.subr.mxu0 0.0
    %232 = vmatpush2.msra.mxu0 0.0
    %233 = vmatprep.mubr.f32.mxu0 0.0
    %234 = vmatmul.mubr.f32.gmra.mxu0 %v167
    %v235 = vpop.f32.mrf.mxu0
    %v236 = vadd.f32 0.0, %v235
    %v237 = vpop.f32.mrf.mxu0
    %238 = vdwg.mxu0
    %v239 = vadd.f32 %v166, %v236
    %v240 = vxor.u32 %v239, 2147483648
    %v241 = vmul.f32 %v240, 1.442695
    %v242 = vpow.pop %v241
    %v243 = vadd.f32 %v242, 1.0
    %v244 = vrcp.pop %v243
    %v245 = vmul.f32 1.0, %v244
    %v246 = vtanh.pop %v239
    %v247 = vmul.f32 %v245, %v152
    %249 = vrot.lane.b32.xlu0 %v246, 64
    %v250 = vpop.permute.xlu0 %249
    %v252 = vmul.f32 %v245, %v250
    %254 = vrot.lane.b32.xlu0 %v252, 32
    %v255 = vpop.permute.xlu0 %254
    %v257 = vadd.f32 %v247, %v255
    %v258 = vtanh.pop %v257
    %260 = vrot.lane.b32.xlu0 %v258, 64
    %v261 = vpop.permute.xlu0 %260
    %v263 = vmul.f32 %v245, %v261
    %265 = vrot.lane.b32.xlu0 %v263, 32
    %v266 = vpop.permute.xlu0 %265
    %s268 = scalar_lea.vmem [#allocation9], 2
    %269 = vst.msk [vmem:[%s268] sm:$0x3] %vm163, %v266
    %s270 = scalar_lea.vmem [#allocation6], 4
    %v271 = vld [vmem:[%s270] sm:$0x3]
    %v272 = vsel %vm56, %v266, 0
    %274 = vmatprep.subr.mxu0 0.0
    %275 = vmatpush1.msra.mxu0 0.0
    %276 = vmatprep.subr.mxu0 0.0
    %277 = vmatpush1.msra.mxu0 0.0
    %278 = vmatprep.subr.mxu0 0.0
    %279 = vmatpush1.msra.mxu0 0.0
    %280 = vmatprep.subr.mxu0 0.0
    %281 = vmatpush1.msra.mxu0 0.0
    %282 = vmatprep.subr.mxu0 0.0
    %283 = vmatpush1.msra.mxu0 0.0
    %284 = vmatprep.subr.mxu0 0.0
    %285 = vmatpush1.msra.mxu0 0.0
    %286 = vmatprep.subr.mxu0 0.0
    %287 = vmatpush1.msra.mxu0 0.0
    %288 = vmatprep.subr.mxu0 0.0
    %289 = vmatpush1.msra.mxu0 0.0
    %290 = vmatprep.subr.mxu0 0.0
    %291 = vmatpush1.msra.mxu0 0.0
    %292 = vmatprep.subr.mxu0 0.0
    %293 = vmatpush1.msra.mxu0 0.0
    %294 = vmatprep.subr.mxu0 0.0
    %295 = vmatpush1.msra.mxu0 0.0
    %296 = vmatprep.subr.mxu0 0.0
    %297 = vmatpush1.msra.mxu0 0.0
    %298 = vmatprep.subr.mxu0 0.0
    %299 = vmatpush1.msra.mxu0 %v52
    %300 = vmatprep.subr.mxu0 0.0
    %301 = vmatpush1.msra.mxu0 %v51
    %302 = vmatprep.subr.mxu0 0.0
    %303 = vmatpush1.msra.mxu0 %v50
    %304 = vmatprep.subr.mxu0 0.0
    %305 = vmatpush1.msra.mxu0 %v49
    %306 = vmatprep.subr.mxu0 0.0
    %307 = vmatpush2.msra.mxu0 0.0
    %308 = vmatprep.subr.mxu0 0.0
    %309 = vmatpush2.msra.mxu0 0.0
    %310 = vmatprep.subr.mxu0 0.0
    %311 = vmatpush2.msra.mxu0 0.0
    %312 = vmatprep.subr.mxu0 0.0
    %313 = vmatpush2.msra.mxu0 0.0
    %314 = vmatprep.subr.mxu0 0.0
    %315 = vmatpush2.msra.mxu0 0.0
    %316 = vmatprep.subr.mxu0 0.0
    %317 = vmatpush2.msra.mxu0 0.0
    %318 = vmatprep.subr.mxu0 0.0
    %319 = vmatpush2.msra.mxu0 0.0
    %320 = vmatprep.subr.mxu0 0.0
    %321 = vmatpush2.msra.mxu0 0.0
    %322 = vmatprep.subr.mxu0 0.0
    %323 = vmatpush2.msra.mxu0 0.0
    %324 = vmatprep.subr.mxu0 0.0
    %325 = vmatpush2.msra.mxu0 0.0
    %326 = vmatprep.subr.mxu0 0.0
    %327 = vmatpush2.msra.mxu0 0.0
    %328 = vmatprep.subr.mxu0 0.0
    %329 = vmatpush2.msra.mxu0 0.0
    %330 = vmatprep.subr.mxu0 0.0
    %331 = vmatpush2.msra.mxu0 0.0
    %332 = vmatprep.subr.mxu0 0.0
    %333 = vmatpush2.msra.mxu0 0.0
    %334 = vmatprep.subr.mxu0 0.0
    %335 = vmatpush2.msra.mxu0 0.0
    %336 = vmatprep.subr.mxu0 0.0
    %337 = vmatpush2.msra.mxu0 0.0
    %338 = vmatprep.mubr.f32.mxu0 0.0
    %339 = vmatmul.mubr.f32.gmra.mxu0 %v272
    %v340 = vpop.f32.mrf.mxu0
    %v341 = vadd.f32 0.0, %v340
    %v342 = vpop.f32.mrf.mxu0
    %343 = vdwg.mxu0
    %v344 = vadd.f32 %v271, %v341
    %v345 = vxor.u32 %v344, 2147483648
    %v346 = vmul.f32 %v345, 1.442695
    %v347 = vpow.pop %v346
    %v348 = vadd.f32 %v347, 1.0
    %v349 = vrcp.pop %v348
    %v350 = vmul.f32 1.0, %v349
    %v351 = vtanh.pop %v344
    %v352 = vmul.f32 %v350, %v257
    %354 = vrot.lane.b32.xlu0 %v351, 64
    %v355 = vpop.permute.xlu0 %354
    %v357 = vmul.f32 %v350, %v355
    %359 = vrot.lane.b32.xlu0 %v357, 32
    %v360 = vpop.permute.xlu0 %359
    %v362 = vadd.f32 %v352, %v360
    %v363 = vtanh.pop %v362
    %365 = vrot.lane.b32.xlu0 %v363, 64
    %v366 = vpop.permute.xlu0 %365
    %v368 = vmul.f32 %v350, %v366
    %370 = vrot.lane.b32.xlu0 %v368, 32
    %v371 = vpop.permute.xlu0 %370
    %s373 = scalar_lea.vmem [#allocation9], 4
    %374 = vst.msk [vmem:[%s373] sm:$0x3] %vm163, %v371
    %s375 = scalar_lea.vmem [#allocation6], 6
    %v376 = vld [vmem:[%s375] sm:$0x3]
    %v377 = vsel %vm56, %v371, 0
    %379 = vmatprep.subr.mxu0 0.0
    %380 = vmatpush1.msra.mxu0 0.0
    %381 = vmatprep.subr.mxu0 0.0
    %382 = vmatpush1.msra.mxu0 0.0
    %383 = vmatprep.subr.mxu0 0.0
    %384 = vmatpush1.msra.mxu0 0.0
    %385 = vmatprep.subr.mxu0 0.0
    %386 = vmatpush1.msra.mxu0 0.0
    %387 = vmatprep.subr.mxu0 0.0
    %388 = vmatpush1.msra.mxu0 0.0
    %389 = vmatprep.subr.mxu0 0.0
    %390 = vmatpush1.msra.mxu0 0.0
    %391 = vmatprep.subr.mxu0 0.0
    %392 = vmatpush1.msra.mxu0 0.0
    %393 = vmatprep.subr.mxu0 0.0
    %394 = vmatpush1.msra.mxu0 0.0
    %395 = vmatprep.subr.mxu0 0.0
    %396 = vmatpush1.msra.mxu0 0.0
    %397 = vmatprep.subr.mxu0 0.0
    %398 = vmatpush1.msra.mxu0 0.0
    %399 = vmatprep.subr.mxu0 0.0
    %400 = vmatpush1.msra.mxu0 0.0
    %401 = vmatprep.subr.mxu0 0.0
    %402 = vmatpush1.msra.mxu0 0.0
    %403 = vmatprep.subr.mxu0 0.0
    %404 = vmatpush1.msra.mxu0 %v52
    %405 = vmatprep.subr.mxu0 0.0
    %406 = vmatpush1.msra.mxu0 %v51
    %407 = vmatprep.subr.mxu0 0.0
    %408 = vmatpush1.msra.mxu0 %v50
    %409 = vmatprep.subr.mxu0 0.0
    %410 = vmatpush1.msra.mxu0 %v49
    %411 = vmatprep.subr.mxu0 0.0
    %412 = vmatpush2.msra.mxu0 0.0
    %413 = vmatprep.subr.mxu0 0.0
    %414 = vmatpush2.msra.mxu0 0.0
    %415 = vmatprep.subr.mxu0 0.0
    %416 = vmatpush2.msra.mxu0 0.0
    %417 = vmatprep.subr.mxu0 0.0
    %418 = vmatpush2.msra.mxu0 0.0
    %419 = vmatprep.subr.mxu0 0.0
    %420 = vmatpush2.msra.mxu0 0.0
    %421 = vmatprep.subr.mxu0 0.0
    %422 = vmatpush2.msra.mxu0 0.0
    %423 = vmatprep.subr.mxu0 0.0
    %424 = vmatpush2.msra.mxu0 0.0
    %425 = vmatprep.subr.mxu0 0.0
    %426 = vmatpush2.msra.mxu0 0.0
    %427 = vmatprep.subr.mxu0 0.0
    %428 = vmatpush2.msra.mxu0 0.0
    %429 = vmatprep.subr.mxu0 0.0
    %430 = vmatpush2.msra.mxu0 0.0
    %431 = vmatprep.subr.mxu0 0.0
    %432 = vmatpush2.msra.mxu0 0.0
    %433 = vmatprep.subr.mxu0 0.0
    %434 = vmatpush2.msra.mxu0 0.0
    %435 = vmatprep.subr.mxu0 0.0
    %436 = vmatpush2.msra.mxu0 0.0
    %437 = vmatprep.subr.mxu0 0.0
    %438 = vmatpush2.msra.mxu0 0.0
    %439 = vmatprep.subr.mxu0 0.0
    %440 = vmatpush2.msra.mxu0 0.0
    %441 = vmatprep.subr.mxu0 0.0
    %442 = vmatpush2.msra.mxu0 0.0
    %443 = vmatprep.mubr.f32.mxu0 0.0
    %444 = vmatmul.mubr.f32.gmra.mxu0 %v377
    %v445 = vpop.f32.mrf.mxu0
    %v446 = vadd.f32 0.0, %v445
    %v447 = vpop.f32.mrf.mxu0
    %448 = vdwg.mxu0
    %v449 = vadd.f32 %v376, %v446
    %v450 = vxor.u32 %v449, 2147483648
    %v451 = vmul.f32 %v450, 1.442695
    %v452 = vpow.pop %v451
    %v453 = vadd.f32 %v452, 1.0
    %v454 = vrcp.pop %v453
    %v455 = vmul.f32 1.0, %v454
    %v456 = vtanh.pop %v449
    %v457 = vmul.f32 %v455, %v362
    %459 = vrot.lane.b32.xlu0 %v456, 64
    %v460 = vpop.permute.xlu0 %459
    %v462 = vmul.f32 %v455, %v460
    %464 = vrot.lane.b32.xlu0 %v462, 32
    %v465 = vpop.permute.xlu0 %464
    %v467 = vadd.f32 %v457, %v465
    %v468 = vtanh.pop %v467
    %470 = vrot.lane.b32.xlu0 %v468, 64
    %v471 = vpop.permute.xlu0 %470
    %v473 = vmul.f32 %v455, %v471
    %475 = vrot.lane.b32.xlu0 %v473, 32
    %v476 = vpop.permute.xlu0 %475
    %s478 = scalar_lea.vmem [#allocation9], 6
    %479 = vst.msk [vmem:[%s478] sm:$0x3] %vm163, %v476
    %s480 = scalar_lea.vmem [#allocation6], 8
    %v481 = vld [vmem:[%s480] sm:$0x3]
    %v482 = vsel %vm56, %v476, 0
    %484 = vmatprep.subr.mxu0 0.0
    %485 = vmatpush1.msra.mxu0 0.0
    %486 = vmatprep.subr.mxu0 0.0
    %487 = vmatpush1.msra.mxu0 0.0
    %488 = vmatprep.subr.mxu0 0.0
    %489 = vmatpush1.msra.mxu0 0.0
    %490 = vmatprep.subr.mxu0 0.0
    %491 = vmatpush1.msra.mxu0 0.0
    %492 = vmatprep.subr.mxu0 0.0
    %493 = vmatpush1.msra.mxu0 0.0
    %494 = vmatprep.subr.mxu0 0.0
    %495 = vmatpush1.msra.mxu0 0.0
    %496 = vmatprep.subr.mxu0 0.0
    %497 = vmatpush1.msra.mxu0 0.0
    %498 = vmatprep.subr.mxu0 0.0
    %499 = vmatpush1.msra.mxu0 0.0
    %500 = vmatprep.subr.mxu0 0.0
    %501 = vmatpush1.msra.mxu0 0.0
    %502 = vmatprep.subr.mxu0 0.0
    %503 = vmatpush1.msra.mxu0 0.0
    %504 = vmatprep.subr.mxu0 0.0
    %505 = vmatpush1.msra.mxu0 0.0
    %506 = vmatprep.subr.mxu0 0.0
    %507 = vmatpush1.msra.mxu0 0.0
    %508 = vmatprep.subr.mxu0 0.0
    %509 = vmatpush1.msra.mxu0 %v52
    %510 = vmatprep.subr.mxu0 0.0
    %511 = vmatpush1.msra.mxu0 %v51
    %512 = vmatprep.subr.mxu0 0.0
    %513 = vmatpush1.msra.mxu0 %v50
    %514 = vmatprep.subr.mxu0 0.0
    %515 = vmatpush1.msra.mxu0 %v49
    %516 = vmatprep.subr.mxu0 0.0
    %517 = vmatpush2.msra.mxu0 0.0
    %518 = vmatprep.subr.mxu0 0.0
    %519 = vmatpush2.msra.mxu0 0.0
    %520 = vmatprep.subr.mxu0 0.0
    %521 = vmatpush2.msra.mxu0 0.0
    %522 = vmatprep.subr.mxu0 0.0
    %523 = vmatpush2.msra.mxu0 0.0
    %524 = vmatprep.subr.mxu0 0.0
    %525 = vmatpush2.msra.mxu0 0.0
    %526 = vmatprep.subr.mxu0 0.0
    %527 = vmatpush2.msra.mxu0 0.0
    %528 = vmatprep.subr.mxu0 0.0
    %529 = vmatpush2.msra.mxu0 0.0
    %530 = vmatprep.subr.mxu0 0.0
    %531 = vmatpush2.msra.mxu0 0.0
    %532 = vmatprep.subr.mxu0 0.0
    %533 = vmatpush2.msra.mxu0 0.0
    %534 = vmatprep.subr.mxu0 0.0
    %535 = vmatpush2.msra.mxu0 0.0
    %536 = vmatprep.subr.mxu0 0.0
    %537 = vmatpush2.msra.mxu0 0.0
    %538 = vmatprep.subr.mxu0 0.0
    %539 = vmatpush2.msra.mxu0 0.0
    %540 = vmatprep.subr.mxu0 0.0
    %541 = vmatpush2.msra.mxu0 0.0
    %542 = vmatprep.subr.mxu0 0.0
    %543 = vmatpush2.msra.mxu0 0.0
    %544 = vmatprep.subr.mxu0 0.0
    %545 = vmatpush2.msra.mxu0 0.0
    %546 = vmatprep.subr.mxu0 0.0
    %547 = vmatpush2.msra.mxu0 0.0
    %548 = vmatprep.mubr.f32.mxu0 0.0
    %549 = vmatmul.mubr.f32.gmra.mxu0 %v482
    %v550 = vpop.f32.mrf.mxu0
    %v551 = vadd.f32 0.0, %v550
    %v552 = vpop.f32.mrf.mxu0
    %553 = vdwg.mxu0
    %v554 = vadd.f32 %v481, %v551
    %v555 = vxor.u32 %v554, 2147483648
    %v556 = vmul.f32 %v555, 1.442695
    %v557 = vpow.pop %v556
    %v558 = vadd.f32 %v557, 1.0
    %v559 = vrcp.pop %v558
    %v560 = vmul.f32 1.0, %v559
    %v561 = vtanh.pop %v554
    %v562 = vmul.f32 %v560, %v467
    %564 = vrot.lane.b32.xlu0 %v561, 64
    %v565 = vpop.permute.xlu0 %564
    %v567 = vmul.f32 %v560, %v565
    %569 = vrot.lane.b32.xlu0 %v567, 32
    %v570 = vpop.permute.xlu0 %569
    %v572 = vadd.f32 %v562, %v570
    %v573 = vtanh.pop %v572
    %575 = vrot.lane.b32.xlu0 %v573, 64
    %v576 = vpop.permute.xlu0 %575
    %v578 = vmul.f32 %v560, %v576
    %580 = vrot.lane.b32.xlu0 %v578, 32
    %v581 = vpop.permute.xlu0 %580
    %s583 = scalar_lea.vmem [#allocation9], 8
    %584 = vst.msk [vmem:[%s583] sm:$0x3] %vm163, %v581
    %s585 = scalar_lea.vmem [#allocation6], 10
    %v586 = vld [vmem:[%s585] sm:$0x3]
    %v587 = vsel %vm56, %v581, 0
    %589 = vmatprep.subr.mxu0 0.0
    %590 = vmatpush1.msra.mxu0 0.0
    %591 = vmatprep.subr.mxu0 0.0
    %592 = vmatpush1.msra.mxu0 0.0
    %593 = vmatprep.subr.mxu0 0.0
    %594 = vmatpush1.msra.mxu0 0.0
    %595 = vmatprep.subr.mxu0 0.0
    %596 = vmatpush1.msra.mxu0 0.0
    %597 = vmatprep.subr.mxu0 0.0
    %598 = vmatpush1.msra.mxu0 0.0
    %599 = vmatprep.subr.mxu0 0.0
    %600 = vmatpush1.msra.mxu0 0.0
    %601 = vmatprep.subr.mxu0 0.0
    %602 = vmatpush1.msra.mxu0 0.0
    %603 = vmatprep.subr.mxu0 0.0
    %604 = vmatpush1.msra.mxu0 0.0
    %605 = vmatprep.subr.mxu0 0.0
    %606 = vmatpush1.msra.mxu0 0.0
    %607 = vmatprep.subr.mxu0 0.0
    %608 = vmatpush1.msra.mxu0 0.0
    %609 = vmatprep.subr.mxu0 0.0
    %610 = vmatpush1.msra.mxu0 0.0
    %611 = vmatprep.subr.mxu0 0.0
    %612 = vmatpush1.msra.mxu0 0.0
    %613 = vmatprep.subr.mxu0 0.0
    %614 = vmatpush1.msra.mxu0 %v52
    %615 = vmatprep.subr.mxu0 0.0
    %616 = vmatpush1.msra.mxu0 %v51
    %617 = vmatprep.subr.mxu0 0.0
    %618 = vmatpush1.msra.mxu0 %v50
    %619 = vmatprep.subr.mxu0 0.0
    %620 = vmatpush1.msra.mxu0 %v49
    %621 = vmatprep.subr.mxu0 0.0
    %622 = vmatpush2.msra.mxu0 0.0
    %623 = vmatprep.subr.mxu0 0.0
    %624 = vmatpush2.msra.mxu0 0.0
    %625 = vmatprep.subr.mxu0 0.0
    %626 = vmatpush2.msra.mxu0 0.0
    %627 = vmatprep.subr.mxu0 0.0
    %628 = vmatpush2.msra.mxu0 0.0
    %629 = vmatprep.subr.mxu0 0.0
    %630 = vmatpush2.msra.mxu0 0.0
    %631 = vmatprep.subr.mxu0 0.0
    %632 = vmatpush2.msra.mxu0 0.0
    %633 = vmatprep.subr.mxu0 0.0
    %634 = vmatpush2.msra.mxu0 0.0
    %635 = vmatprep.subr.mxu0 0.0
    %636 = vmatpush2.msra.mxu0 0.0
    %637 = vmatprep.subr.mxu0 0.0
    %638 = vmatpush2.msra.mxu0 0.0
    %639 = vmatprep.subr.mxu0 0.0
    %640 = vmatpush2.msra.mxu0 0.0
    %641 = vmatprep.subr.mxu0 0.0
    %642 = vmatpush2.msra.mxu0 0.0
    %643 = vmatprep.subr.mxu0 0.0
    %644 = vmatpush2.msra.mxu0 0.0
    %645 = vmatprep.subr.mxu0 0.0
    %646 = vmatpush2.msra.mxu0 0.0
    %647 = vmatprep.subr.mxu0 0.0
    %648 = vmatpush2.msra.mxu0 0.0
    %649 = vmatprep.subr.mxu0 0.0
    %650 = vmatpush2.msra.mxu0 0.0
    %651 = vmatprep.subr.mxu0 0.0
    %652 = vmatpush2.msra.mxu0 0.0
    %653 = vmatprep.mubr.f32.mxu0 0.0
    %654 = vmatmul.mubr.f32.gmra.mxu0 %v587
    %v655 = vpop.f32.mrf.mxu0
    %v656 = vadd.f32 0.0, %v655
    %v657 = vpop.f32.mrf.mxu0
    %658 = vdwg.mxu0
    %v659 = vadd.f32 %v586, %v656
    %v660 = vxor.u32 %v659, 2147483648
    %v661 = vmul.f32 %v660, 1.442695
    %v662 = vpow.pop %v661
    %v663 = vadd.f32 %v662, 1.0
    %v664 = vrcp.pop %v663
    %v665 = vmul.f32 1.0, %v664
    %v666 = vtanh.pop %v659
    %v667 = vmul.f32 %v665, %v572
    %669 = vrot.lane.b32.xlu0 %v666, 64
    %v670 = vpop.permute.xlu0 %669
    %v672 = vmul.f32 %v665, %v670
    %674 = vrot.lane.b32.xlu0 %v672, 32
    %v675 = vpop.permute.xlu0 %674
    %v677 = vadd.f32 %v667, %v675
    %v678 = vtanh.pop %v677
    %680 = vrot.lane.b32.xlu0 %v678, 64
    %v681 = vpop.permute.xlu0 %680
    %v683 = vmul.f32 %v665, %v681
    %685 = vrot.lane.b32.xlu0 %v683, 32
    %v686 = vpop.permute.xlu0 %685
    %s688 = scalar_lea.vmem [#allocation9], 10
    %689 = vst.msk [vmem:[%s688] sm:$0x3] %vm163, %v686
    %s690 = scalar_lea.vmem [#allocation6], 12
    %v691 = vld [vmem:[%s690] sm:$0x3]
    %v692 = vsel %vm56, %v686, 0
    %694 = vmatprep.subr.mxu0 0.0
    %695 = vmatpush1.msra.mxu0 0.0
    %696 = vmatprep.subr.mxu0 0.0
    %697 = vmatpush1.msra.mxu0 0.0
    %698 = vmatprep.subr.mxu0 0.0
    %699 = vmatpush1.msra.mxu0 0.0
    %700 = vmatprep.subr.mxu0 0.0
    %701 = vmatpush1.msra.mxu0 0.0
    %702 = vmatprep.subr.mxu0 0.0
    %703 = vmatpush1.msra.mxu0 0.0
    %704 = vmatprep.subr.mxu0 0.0
    %705 = vmatpush1.msra.mxu0 0.0
    %706 = vmatprep.subr.mxu0 0.0
    %707 = vmatpush1.msra.mxu0 0.0
    %708 = vmatprep.subr.mxu0 0.0
    %709 = vmatpush1.msra.mxu0 0.0
    %710 = vmatprep.subr.mxu0 0.0
    %711 = vmatpush1.msra.mxu0 0.0
    %712 = vmatprep.subr.mxu0 0.0
    %713 = vmatpush1.msra.mxu0 0.0
    %714 = vmatprep.subr.mxu0 0.0
    %715 = vmatpush1.msra.mxu0 0.0
    %716 = vmatprep.subr.mxu0 0.0
    %717 = vmatpush1.msra.mxu0 0.0
    %718 = vmatprep.subr.mxu0 0.0
    %719 = vmatpush1.msra.mxu0 %v52
    %720 = vmatprep.subr.mxu0 0.0
    %721 = vmatpush1.msra.mxu0 %v51
    %722 = vmatprep.subr.mxu0 0.0
    %723 = vmatpush1.msra.mxu0 %v50
    %724 = vmatprep.subr.mxu0 0.0
    %725 = vmatpush1.msra.mxu0 %v49
    %726 = vmatprep.subr.mxu0 0.0
    %727 = vmatpush2.msra.mxu0 0.0
    %728 = vmatprep.subr.mxu0 0.0
    %729 = vmatpush2.msra.mxu0 0.0
    %730 = vmatprep.subr.mxu0 0.0
    %731 = vmatpush2.msra.mxu0 0.0
    %732 = vmatprep.subr.mxu0 0.0
    %733 = vmatpush2.msra.mxu0 0.0
    %734 = vmatprep.subr.mxu0 0.0
    %735 = vmatpush2.msra.mxu0 0.0
    %736 = vmatprep.subr.mxu0 0.0
    %737 = vmatpush2.msra.mxu0 0.0
    %738 = vmatprep.subr.mxu0 0.0
    %739 = vmatpush2.msra.mxu0 0.0
    %740 = vmatprep.subr.mxu0 0.0
    %741 = vmatpush2.msra.mxu0 0.0
    %742 = vmatprep.subr.mxu0 0.0
    %743 = vmatpush2.msra.mxu0 0.0
    %744 = vmatprep.subr.mxu0 0.0
    %745 = vmatpush2.msra.mxu0 0.0
    %746 = vmatprep.subr.mxu0 0.0
    %747 = vmatpush2.msra.mxu0 0.0
    %748 = vmatprep.subr.mxu0 0.0
    %749 = vmatpush2.msra.mxu0 0.0
    %750 = vmatprep.subr.mxu0 0.0
    %751 = vmatpush2.msra.mxu0 0.0
    %752 = vmatprep.subr.mxu0 0.0
    %753 = vmatpush2.msra.mxu0 0.0
    %754 = vmatprep.subr.mxu0 0.0
    %755 = vmatpush2.msra.mxu0 0.0
    %756 = vmatprep.subr.mxu0 0.0
    %757 = vmatpush2.msra.mxu0 0.0
    %758 = vmatprep.mubr.f32.mxu0 0.0
    %759 = vmatmul.mubr.f32.gmra.mxu0 %v692
    %v760 = vpop.f32.mrf.mxu0
    %v761 = vadd.f32 0.0, %v760
    %v762 = vpop.f32.mrf.mxu0
    %763 = vdwg.mxu0
    %v764 = vadd.f32 %v691, %v761
    %v765 = vxor.u32 %v764, 2147483648
    %v766 = vmul.f32 %v765, 1.442695
    %v767 = vpow.pop %v766
    %v768 = vadd.f32 %v767, 1.0
    %v769 = vrcp.pop %v768
    %v770 = vmul.f32 1.0, %v769
    %v771 = vtanh.pop %v764
    %v772 = vmul.f32 %v770, %v677
    %774 = vrot.lane.b32.xlu0 %v771, 64
    %v775 = vpop.permute.xlu0 %774
    %v777 = vmul.f32 %v770, %v775
    %779 = vrot.lane.b32.xlu0 %v777, 32
    %v780 = vpop.permute.xlu0 %779
    %v782 = vadd.f32 %v772, %v780
    %v783 = vtanh.pop %v782
    %785 = vrot.lane.b32.xlu0 %v783, 64
    %v786 = vpop.permute.xlu0 %785
    %v788 = vmul.f32 %v770, %v786
    %790 = vrot.lane.b32.xlu0 %v788, 32
    %v791 = vpop.permute.xlu0 %790
    %s793 = scalar_lea.vmem [#allocation9], 12
    %794 = vst.msk [vmem:[%s793] sm:$0x3] %vm163, %v791
    %s795 = scalar_lea.vmem [#allocation6], 14
    %v796 = vld [vmem:[%s795] sm:$0x3]
    %v797 = vsel %vm56, %v791, 0
    %799 = vmatprep.subr.mxu0 0.0
    %800 = vmatpush1.msra.mxu0 0.0
    %801 = vmatprep.subr.mxu0 0.0
    %802 = vmatpush1.msra.mxu0 0.0
    %803 = vmatprep.subr.mxu0 0.0
    %804 = vmatpush1.msra.mxu0 0.0
    %805 = vmatprep.subr.mxu0 0.0
    %806 = vmatpush1.msra.mxu0 0.0
    %807 = vmatprep.subr.mxu0 0.0
    %808 = vmatpush1.msra.mxu0 0.0
    %809 = vmatprep.subr.mxu0 0.0
    %810 = vmatpush1.msra.mxu0 0.0
    %811 = vmatprep.subr.mxu0 0.0
    %812 = vmatpush1.msra.mxu0 0.0
    %813 = vmatprep.subr.mxu0 0.0
    %814 = vmatpush1.msra.mxu0 0.0
    %815 = vmatprep.subr.mxu0 0.0
    %816 = vmatpush1.msra.mxu0 0.0
    %817 = vmatprep.subr.mxu0 0.0
    %818 = vmatpush1.msra.mxu0 0.0
    %819 = vmatprep.subr.mxu0 0.0
    %820 = vmatpush1.msra.mxu0 0.0
    %821 = vmatprep.subr.mxu0 0.0
    %822 = vmatpush1.msra.mxu0 0.0
    %823 = vmatprep.subr.mxu0 0.0
    %824 = vmatpush1.msra.mxu0 %v52
    %825 = vmatprep.subr.mxu0 0.0
    %826 = vmatpush1.msra.mxu0 %v51
    %827 = vmatprep.subr.mxu0 0.0
    %828 = vmatpush1.msra.mxu0 %v50
    %829 = vmatprep.subr.mxu0 0.0
    %830 = vmatpush1.msra.mxu0 %v49
    %831 = vmatprep.subr.mxu0 0.0
    %832 = vmatpush2.msra.mxu0 0.0
    %833 = vmatprep.subr.mxu0 0.0
    %834 = vmatpush2.msra.mxu0 0.0
    %835 = vmatprep.subr.mxu0 0.0
    %836 = vmatpush2.msra.mxu0 0.0
    %837 = vmatprep.subr.mxu0 0.0
    %838 = vmatpush2.msra.mxu0 0.0
    %839 = vmatprep.subr.mxu0 0.0
    %840 = vmatpush2.msra.mxu0 0.0
    %841 = vmatprep.subr.mxu0 0.0
    %842 = vmatpush2.msra.mxu0 0.0
    %843 = vmatprep.subr.mxu0 0.0
    %844 = vmatpush2.msra.mxu0 0.0
    %845 = vmatprep.subr.mxu0 0.0
    %846 = vmatpush2.msra.mxu0 0.0
    %847 = vmatprep.subr.mxu0 0.0
    %848 = vmatpush2.msra.mxu0 0.0
    %849 = vmatprep.subr.mxu0 0.0
    %850 = vmatpush2.msra.mxu0 0.0
    %851 = vmatprep.subr.mxu0 0.0
    %852 = vmatpush2.msra.mxu0 0.0
    %853 = vmatprep.subr.mxu0 0.0
    %854 = vmatpush2.msra.mxu0 0.0
    %855 = vmatprep.subr.mxu0 0.0
    %856 = vmatpush2.msra.mxu0 0.0
    %857 = vmatprep.subr.mxu0 0.0
    %858 = vmatpush2.msra.mxu0 0.0
    %859 = vmatprep.subr.mxu0 0.0
    %860 = vmatpush2.msra.mxu0 0.0
    %861 = vmatprep.subr.mxu0 0.0
    %862 = vmatpush2.msra.mxu0 0.0
    %863 = vmatprep.mubr.f32.mxu0 0.0
    %864 = vmatmul.mubr.f32.gmra.mxu0 %v797
    %v865 = vpop.f32.mrf.mxu0
    %v866 = vadd.f32 0.0, %v865
    %v867 = vpop.f32.mrf.mxu0
    %868 = vdwg.mxu0
    %v869 = vadd.f32 %v796, %v866
    %v870 = vxor.u32 %v869, 2147483648
    %v871 = vmul.f32 %v870, 1.442695
    %v872 = vpow.pop %v871
    %v873 = vadd.f32 %v872, 1.0
    %v874 = vrcp.pop %v873
    %v875 = vmul.f32 1.0, %v874
    %v876 = vtanh.pop %v869
    %v877 = vmul.f32 %v875, %v782
    %879 = vrot.lane.b32.xlu0 %v876, 64
    %v880 = vpop.permute.xlu0 %879
    %v882 = vmul.f32 %v875, %v880
    %884 = vrot.lane.b32.xlu0 %v882, 32
    %v885 = vpop.permute.xlu0 %884
    %v887 = vadd.f32 %v877, %v885
    %v888 = vtanh.pop %v887
    %890 = vrot.lane.b32.xlu0 %v888, 64
    %v891 = vpop.permute.xlu0 %890
    %v893 = vmul.f32 %v875, %v891
    %895 = vrot.lane.b32.xlu0 %v893, 32
    %v896 = vpop.permute.xlu0 %895
    %s898 = scalar_lea.vmem [#allocation9], 14
    %899 = vst.msk [vmem:[%s898] sm:$0x3] %vm163, %v896
    %900 = vst.msk [vmem:[#allocation2] sm:$0x3] %vm163, %v896
    %902 = vrot.lane.b32.xlu0 %v887, 96
    %v903 = vpop.permute.xlu0 %902
    %905 = vst.msk [vmem:[#allocation3] sm:$0x3] %vm163, %v903
    // Predicated region
    $region18: #{tpu_custom_call.1} parent=1 // pred_check
      %p906 = pneg %p28
    $region19: #{tpu_custom_call.1} parent=1 // pred_check_branch
      %908 = sbr.rel (%p906) target = $region21
    $region20: #{tpu_custom_call.1} parent=1 // pred_region
      %909 = vst.msk [vmem:[#allocation10] sm:$0x3] %vm163, %v896
      %910 = vst.msk [vmem:[#allocation12] sm:$0x3] %vm163, %v903
    $region21: #{tpu_custom_call.1} parent=1 // pred_fallthru
      _
    // Predicated region
    $region22: #{tpu_custom_call.1} parent=1 // pred_check
      _
    $region23: #{tpu_custom_call.1} parent=1 // pred_check_branch
      %912 = sbr.rel (0) target = $region25
    $region24: #{tpu_custom_call.1} parent=1 // pred_region
      %s914 = ssub.s32 256, 256
      %915 = vsyncadd [#allocation8], %s914
      %s916 = sshll.u32 [#allocation9], 4
      %s917 = int_to_ptr.vmem [resolvable:$true] %s916
      %922 = dma.vmem_to_hbm [thread:$0]  %s917, 256, %s2, [#allocation8], 32, 32, 2
    $region25: #{tpu_custom_call.1} parent=1 // pred_fallthru
      _
    // Predicated region
    $region26: #{tpu_custom_call.1} parent=1 // pred_check
      _
    $region27: #{tpu_custom_call.1} parent=1 // pred_check_branch
      %924 = sbr.rel (0) target = $region29
    $region28: #{tpu_custom_call.1} parent=1 // pred_region
      %s926 = ssub.s32 32, 32
      %927 = vsyncadd [#allocation11], %s926
      %s929 = sshll.u32 [#allocation10], 4
      %s930 = int_to_ptr.vmem [resolvable:$true] %s929
      %932 = dma.vmem_to_hbm [thread:$0]  %s930, 32, %s3, [#allocation11]
    $region29: #{tpu_custom_call.1} parent=1 // pred_fallthru
      _
    // Predicated region
    $region30: #{tpu_custom_call.1} parent=1 // pred_check
      _
    $region31: #{tpu_custom_call.1} parent=1 // pred_check_branch
      %934 = sbr.rel (0) target = $region33
    $region32: #{tpu_custom_call.1} parent=1 // pred_region
      %s936 = ssub.s32 32, 32
      %937 = vsyncadd [#allocation11], %s936
      %s939 = sshll.u32 [#allocation12], 4
      %s940 = int_to_ptr.vmem [resolvable:$true] %s939
      %942 = dma.vmem_to_hbm [thread:$0]  %s940, 32, %s4, [#allocation11]
    $region33: #{tpu_custom_call.1} parent=1 // pred_fallthru
      _
    // Predicated region
    $region34: #{tpu_custom_call.1} parent=1 // pred_check
      _
    $region35: #{tpu_custom_call.1} parent=1 // pred_check_branch
      %944 = sbr.rel (0) target = $region37
    $region36: #{tpu_custom_call.1} parent=1 // pred_region
      %945 = dma.done [#allocation8], 256
    $region37: #{tpu_custom_call.1} parent=1 // pred_fallthru
      _
    // Predicated region
    $region38: #{tpu_custom_call.1} parent=1 // pred_check
      _
    $region39: #{tpu_custom_call.1} parent=1 // pred_check_branch
      %947 = sbr.rel (0) target = $region41
    $region40: #{tpu_custom_call.1} parent=1 // pred_region
      %948 = dma.done [#allocation11], 32
    $region41: #{tpu_custom_call.1} parent=1 // pred_fallthru
      _
    // Predicated region
    $region42: #{tpu_custom_call.1} parent=1 // pred_check
      _
    $region43: #{tpu_custom_call.1} parent=1 // pred_check_branch
      %950 = sbr.rel (0) target = $region45
    $region44: #{tpu_custom_call.1} parent=1 // pred_region
      %951 = dma.done [#allocation11], 32
    $region45: #{tpu_custom_call.1} parent=1 // pred_fallthru
      _
    %952 = vsyncpa [#allocation7], 1
    %953 = vsyncpa [#allocation8], 1
    %954 = vsyncpa [#allocation11], 1
  %955 = vsyncmov [#allocation5]
  %s956 = vpop.sfrf %955
  %p957 = scmp.eq.s32.totalorder %s956, 0
  %p958 = pneg %p957
  %960 = shalt.err (%p958)

</llo_original>
